<compile_context>
chip_gen: v5e
topology: v5e:2x2
jax: 0.10.0
libtpu: 0.0.40
codegen_flags: <defaults>
</compile_context>

<pallas_src>
import functools

import jax
import jax.numpy as jnp
from jax import lax
from jax.experimental import pallas as pl
from jax.experimental.pallas import tpu as pltpu


# ---------------------------------------------------------------------------
# Pointwise (1x1) conv: MXU for K >= 16 (or K*Co >= 512), otherwise unrolled
# VPU broadcast-MAC.  wT: (Co, K), x: (K, M) -> (Co, M) float32.
# ---------------------------------------------------------------------------
def _pointwise(wT, x, *, mxu_bf16=False):
    Co, K = wT.shape
    Mx = x.shape[1]
    if K >= 16 or K * Co >= 512:
        if mxu_bf16:
            # bf16 operands + f32 accumulation: full MXU rate on v5e/v6e/v7x.
            # Small numerics delta vs the PyTorch f32 reference (flagged).
            return jnp.dot(wT.astype(jnp.bfloat16), x.astype(jnp.bfloat16),
                           preferred_element_type=jnp.float32)
        # f32 operands: MXU does a multi-pass f32 decomposition (slower than
        # bf16 but numerically ~exact, matching the f32 PyTorch module).
        return jnp.dot(wT.astype(jnp.float32), x.astype(jnp.float32),
                       preferred_element_type=jnp.float32)
    acc = jnp.zeros((Co, Mx), jnp.float32)
    for k in range(K):                       # unrolled VPU broadcast-MAC
        acc = acc + (wT[:, k:k + 1].astype(jnp.float32)
                     * x[k:k + 1, :].astype(jnp.float32))
    return acc


# ---------------------------------------------------------------------------
# Fused InvertedResidual kernel: one grid step = P packed images.
# ---------------------------------------------------------------------------
def _fused_kernel(*refs, hidden, H, W, P, stride, use_shortcut, expand,
                  mxu_bf16):
    it = iter(refs)
    x_ref = next(it)
    if expand:
        w_exp_ref, s_exp_ref, b_exp_ref = next(it), next(it), next(it)
    w_dw_ref, s_dw_ref, b_dw_ref = next(it), next(it), next(it)
    w_proj_ref, s_proj_ref, b_proj_ref = next(it), next(it), next(it)
    sel_ref = next(it) if stride != 1 else None
    o_ref = next(it)

    M = H * W

    # Weights / folded-BN scales hoisted once per grid step (shared by the
    # P images packed into this block).
    if expand:
        w_exp = w_exp_ref[...]                             # (hidden, Cin)
        s_exp = s_exp_ref[...]
        b_exp = b_exp_ref[...]
    w_dw = w_dw_ref[...]                                   # (hidden, 9)
    s_dw = s_dw_ref[...]
    b_dw = b_dw_ref[...]
    w_proj = w_proj_ref[...]                               # (Cout, hidden)
    s_proj = s_proj_ref[...]
    b_proj = b_proj_ref[...]
    sel = sel_ref[...] if sel_ref is not None else None    # (M, Mo) 0/1

    # 3x3 zero padding folded into border masks, built ONCE at shape (1, M)
    # (0/1 f32) and broadcast over the channel/sublane axis.
    lane = lax.broadcasted_iota(jnp.int32, (1, M), 1)
    col = lane % W
    ones = jnp.ones((1, M), jnp.float32)
    row_ok = {-1: (lane >= W).astype(jnp.float32), 0: ones,
              1: (lane < (H - 1) * W).astype(jnp.float32)}
    col_ok = {-1: (col >= 1).astype(jnp.float32), 0: ones,
              1: (col < (W - 1)).astype(jnp.float32)}
    masks = {}
    for dh in (-1, 0, 1):
        for dw in (-1, 0, 1):
            masks[(dh, dw)] = (None if (dh, dw) == (0, 0)
                               else row_ok[dh] * col_ok[dw])

    for p in range(P):                         # images packed into this block
        x = x_ref[p]                           # (Cin, M)

        # ---- 1) expand 1x1 + BN + ReLU6 (K = Cin is tiny -> VPU MAC) ------
        if expand:
            h = _pointwise(w_exp, x, mxu_bf16=mxu_bf16)    # (hidden, M) f32
            h = jnp.clip(h * s_exp + b_exp, 0.0, 6.0)
        else:
            h = x.astype(jnp.float32)

        # ---- 2) depthwise 3x3 (lane roll + border mask) + BN + ReLU6 ------
        acc = jnp.zeros((hidden, M), jnp.float32)
        for kh in range(3):
            for kw in range(3):
                dh, dw = kh - 1, kw - 1
                off = dh * W + dw
                tap = h if off == 0 else pltpu.roll(h, (-off) % M, axis=1)
                m = masks[(dh, dw)]
                if m is not None:
                    tap = tap * m              # (1, M) broadcasts over sublanes
                acc = acc + tap * w_dw[:, kh * 3 + kw:kh * 3 + kw + 1]
        y = jnp.clip(acc * s_dw + b_dw, 0.0, 6.0)

        # ---- 3) stride-s subsample as 0/1 selection matmul on the MXU -----
        if sel is not None:
            y = jnp.dot(y, sel, preferred_element_type=jnp.float32)

        # ---- 4) project 1x1 (MXU) + BN (+ residual) -----------------------
        out = _pointwise(w_proj, y, mxu_bf16=mxu_bf16)     # (Cout, Mo) f32
        out = out * s_proj + b_proj
        if use_shortcut:
            out = out + x.astype(jnp.float32)
        o_ref[p] = out.astype(o_ref.dtype)


# ---------------------------------------------------------------------------
# Helpers for the wrapper.
# ---------------------------------------------------------------------------
def _make_stride_selection(H, W, stride, dtype=jnp.float32):
    """0/1 matrix (M, Mo) so that y_sub = y @ sel subsamples at (s*ho, s*wo)."""
    Ho = (H - 1) // stride + 1
    Wo = (W - 1) // stride + 1
    M, Mo = H * W, Ho * Wo
    src = ((jnp.arange(Ho) * stride)[:, None] * W
           + (jnp.arange(Wo) * stride)[None, :]).reshape(Mo)
    return jnp.zeros((M, Mo), dtype).at[src, jnp.arange(Mo)].set(1.0)


def _choose_images_per_step(N, in_channel, out_channel, hidden, M, Mo,
                            max_block_bytes=2 << 20, max_pack=8):
    """Largest P dividing N that keeps >= 2 grid steps (v7x has 2 TCs) and a
    modest per-step VMEM footprint."""
    bytes_per_image = 4 * (in_channel * M + out_channel * Mo + 4 * hidden * M)
    best = 1
    for p in range(1, min(N, max_pack) + 1):
        if N % p:
            continue
        if p * bytes_per_image > max_block_bytes:
            continue
        if N >= 2 and N // p < 2:
            continue
        best = p
    return best


# ---------------------------------------------------------------------------
# Wrapper: builds specs, keeps NCHW end to end (free reshapes only).
# ---------------------------------------------------------------------------
def inverted_residual(x_nchw, params, *, in_channel, out_channel, stride,
                      expand_ratio, images_per_step=None, mxu_bf16=False):
    N, C, H, W = x_nchw.shape
    assert C == in_channel
    hidden = in_channel * expand_ratio
    use_shortcut = (stride == 1) and (in_channel == out_channel)
    expand = expand_ratio != 1

    M = H * W
    Ho = (H - 1) // stride + 1
    Wo = (W - 1) // stride + 1
    Mo = Ho * Wo

    P = images_per_step or _choose_images_per_step(
        N, in_channel, out_channel, hidden, M, Mo)
    assert N % P == 0
    G = N // P

    x_flat = x_nchw.reshape(N, C, M)          # NCHW kept; reshape is free

    img_in = pl.BlockSpec((P, in_channel, M), lambda g: (g, 0, 0))
    img_out = pl.BlockSpec((P, out_channel, Mo), lambda g: (g, 0, 0))
    const2 = lambda g: (0, 0)

    in_specs = [img_in]
    args = [x_flat]
    if expand:
        in_specs += [pl.BlockSpec((hidden, in_channel), const2),
                     pl.BlockSpec((hidden, 1), const2),
                     pl.BlockSpec((hidden, 1), const2)]
        args += [params["w_exp"], params["s_exp"], params["b_exp"]]
    in_specs += [pl.BlockSpec((hidden, 9), const2),
                 pl.BlockSpec((hidden, 1), const2),
                 pl.BlockSpec((hidden, 1), const2),
                 pl.BlockSpec((out_channel, hidden), const2),
                 pl.BlockSpec((out_channel, 1), const2),
                 pl.BlockSpec((out_channel, 1), const2)]
    args += [params["w_dw"], params["s_dw"], params["b_dw"],
             params["w_proj"], params["s_proj"], params["b_proj"]]
    if stride != 1:
        in_specs += [pl.BlockSpec((M, Mo), const2)]
        args += [_make_stride_selection(H, W, stride)]

    kernel = functools.partial(
        _fused_kernel, hidden=hidden, H=H, W=W, P=P, stride=stride,
        use_shortcut=use_shortcut, expand=expand, mxu_bf16=mxu_bf16)

    # Advisory cost estimate for XLA's scheduler around the custom call.
    flops_img = 2 * hidden * 9 * M + 2 * out_channel * hidden * Mo
    if expand:
        flops_img += 2 * hidden * in_channel * M
    if stride != 1:
        flops_img += 2 * hidden * M * Mo
    if use_shortcut:
        flops_img += out_channel * Mo
    bytes_accessed = 4 * (x_flat.size + N * out_channel * Mo
                          + G * sum(int(a.size) for a in args[1:]))
    cost = pl.CostEstimate(flops=int(N * flops_img), transcendentals=0,
                           bytes_accessed=int(bytes_accessed))

    out = pl.pallas_call(
        kernel,
        out_shape=jax.ShapeDtypeStruct((N, out_channel, Mo), x_nchw.dtype),
        grid_spec=pltpu.PrefetchScalarGridSpec(
            num_scalar_prefetch=0,
            grid=(G,),
            in_specs=in_specs,
            out_specs=img_out,
        ),
        compiler_params=pltpu.CompilerParams(
            dimension_semantics=("parallel",)),
        cost_estimate=cost,
    )(*args)
    return out.reshape(N, out_channel, Ho, Wo)


# ---------------------------------------------------------------------------
# Parameter construction (eval-mode BN folded into per-channel scale/bias).
# ---------------------------------------------------------------------------
def _fold_bn(gamma, beta, mean, var, eps=1e-5):
    scale = gamma / jnp.sqrt(var + eps)
    bias = beta - mean * scale
    return scale[:, None], bias[:, None]        # (C, 1): channels on sublanes


def make_params(key, in_channel, out_channel, expand_ratio):
    hidden = in_channel * expand_ratio
    k = jax.random.split(key, 15)
    p = {}
    if expand_ratio != 1:
        # torch weight (hidden, in, 1, 1) -> (hidden, in)
        p["w_exp"] = 0.1 * jax.random.normal(k[0], (hidden, in_channel),
                                             jnp.float32)
        p["s_exp"], p["b_exp"] = _fold_bn(
            1.0 + 0.1 * jax.random.normal(k[1], (hidden,), jnp.float32),
            0.1 * jax.random.normal(k[2], (hidden,), jnp.float32),
            0.05 * jax.random.normal(k[3], (hidden,), jnp.float32),
            jnp.abs(1.0 + 0.1 * jax.random.normal(k[4], (hidden,), jnp.float32)))
    # depthwise torch weight (hidden, 1, 3, 3) -> (hidden, 9)
    p["w_dw"] = (0.1 * jax.random.normal(k[5], (hidden, 3, 3), jnp.float32)
                 ).reshape(hidden, 9)
    p["s_dw"], p["b_dw"] = _fold_bn(
        1.0 + 0.1 * jax.random.normal(k[6], (hidden,), jnp.float32),
        0.1 * jax.random.normal(k[7], (hidden,), jnp.float32),
        0.05 * jax.random.normal(k[8], (hidden,), jnp.float32),
        jnp.abs(1.0 + 0.1 * jax.random.normal(k[9], (hidden,), jnp.float32)))
    # project torch weight (out, hidden, 1, 1) -> (out, hidden)
    p["w_proj"] = 0.1 * jax.random.normal(k[10], (out_channel, hidden),
                                          jnp.float32)
    p["s_proj"], p["b_proj"] = _fold_bn(
        1.0 + 0.1 * jax.random.normal(k[11], (out_channel,), jnp.float32),
        0.1 * jax.random.normal(k[12], (out_channel,), jnp.float32),
        0.05 * jax.random.normal(k[13], (out_channel,), jnp.float32),
        jnp.abs(1.0 + 0.1 * jax.random.normal(k[14], (out_channel,), jnp.float32)))
    return p


# ---------------------------------------------------------------------------
# Pure-JAX reference (XLA convs) for the correctness check.
# ---------------------------------------------------------------------------
def inverted_residual_reference(x, params, *, in_channel, out_channel, stride,
                                expand_ratio):
    hidden = in_channel * expand_ratio
    dn = ("NCHW", "OIHW", "NCHW")
    prec = lax.Precision.HIGHEST
    h = x
    if expand_ratio != 1:
        w = params["w_exp"][:, :, None, None]
        h = lax.conv_general_dilated(h, w, (1, 1), "VALID",
                                     dimension_numbers=dn, precision=prec)
        h = jnp.clip(h * params["s_exp"].reshape(1, -1, 1, 1)
                     + params["b_exp"].reshape(1, -1, 1, 1), 0.0, 6.0)
    wdw = params["w_dw"].reshape(hidden, 1, 3, 3)
    h = lax.conv_general_dilated(h, wdw, (stride, stride), ((1, 1), (1, 1)),
                                 dimension_numbers=dn,
                                 feature_group_count=hidden, precision=prec)
    h = jnp.clip(h * params["s_dw"].reshape(1, -1, 1, 1)
                 + params["b_dw"].reshape(1, -1, 1, 1), 0.0, 6.0)
    wp = params["w_proj"][:, :, None, None]
    y = lax.conv_general_dilated(h, wp, (1, 1), "VALID",
                                 dimension_numbers=dn, precision=prec)
    y = (y * params["s_proj"].reshape(1, -1, 1, 1)
         + params["b_proj"].reshape(1, -1, 1, 1))
    if stride == 1 and in_channel == out_channel:
        y = y + x
    return y


if __name__ == "__main__":
    key = jax.random.PRNGKey(0)

    def run_case(case_key, N, H, W, in_channel, out_channel, stride,
                 expand_ratio, tol):
        kx, kp = jax.random.split(case_key)
        x = jax.random.normal(kx, (N, in_channel, H, W), jnp.float32)
        params = make_params(kp, in_channel, out_channel, expand_ratio)
        out = inverted_residual(x, params, in_channel=in_channel,
                                out_channel=out_channel, stride=stride,
                                expand_ratio=expand_ratio)
        out = jax.block_until_ready(out)
        Ho = (H - 1) // stride + 1
        Wo = (W - 1) // stride + 1
        assert out.shape == (N, out_channel, Ho, Wo)
        ref = inverted_residual_reference(
            x, params, in_channel=in_channel, out_channel=out_channel,
            stride=stride, expand_ratio=expand_ratio)
        err = float(jnp.max(jnp.abs(out - ref)))
        # Tolerance deliberately a bit above exact-f32 (per the perf review's
        # correctness note) to absorb the MXU's multi-pass f32 decomposition
        # vs XLA's conv; structural bugs would be orders of magnitude larger.
        assert err <= tol, err
        return err

    # Main config (matches InvertedResidual(4, 4, stride=1, expand_ratio=6)).
    # N=4 -> 2 images packed per grid step, 2 "parallel" grid steps (v7x TCs).
    run_case(jax.random.fold_in(key, 0), N=4, H=16, W=16, in_channel=4,
             out_channel=4, stride=1, expand_ratio=6, tol=2e-3)
    # Secondary config: exercises the stride-2 selection-matrix path and the
    # non-shortcut branch.
    run_case(jax.random.fold_in(key, 1), N=4, H=16, W=16, in_channel=4,
             out_channel=8, stride=2, expand_ratio=6, tol=2e-3)

    print("KERNEL_OK")
</pallas_src>

<mosaic_0001>
module attributes {stable_mosaic.version = 11 : i64} {
  func.func @_fused_kernel(%arg0: i32, %arg1: memref<2x4x256xf32, #tpu.memory_space<vmem>>, %arg2: memref<24x4xf32, #tpu.memory_space<vmem>>, %arg3: memref<24x1xf32, #tpu.memory_space<vmem>>, %arg4: memref<24x1xf32, #tpu.memory_space<vmem>>, %arg5: memref<24x9xf32, #tpu.memory_space<vmem>>, %arg6: memref<24x1xf32, #tpu.memory_space<vmem>>, %arg7: memref<24x1xf32, #tpu.memory_space<vmem>>, %arg8: memref<4x24xf32, #tpu.memory_space<vmem>>, %arg9: memref<4x1xf32, #tpu.memory_space<vmem>>, %arg10: memref<4x1xf32, #tpu.memory_space<vmem>>, %arg11: memref<2x4x256xf32, #tpu.memory_space<vmem>>) attributes {dimension_semantics = [#tpu.dimension_semantics<parallel>], iteration_bounds = array<i64: 2>, scalar_prefetch = 0 : i64, scratch_operands = 0 : i64, tpu.core_type = #tpu.core_type<tc>, window_params = [{transform_indices = @transform_0, window_bounds = array<i64: 2, 4, 256>}, {pipeline_mode = #tpu.pipeline_mode<synchronous>, transform_indices = @transform_1, window_bounds = array<i64: 24, 4>}, {pipeline_mode = #tpu.pipeline_mode<synchronous>, transform_indices = @transform_2, window_bounds = array<i64: 24, 1>}, {pipeline_mode = #tpu.pipeline_mode<synchronous>, transform_indices = @transform_3, window_bounds = array<i64: 24, 1>}, {pipeline_mode = #tpu.pipeline_mode<synchronous>, transform_indices = @transform_4, window_bounds = array<i64: 24, 9>}, {pipeline_mode = #tpu.pipeline_mode<synchronous>, transform_indices = @transform_5, window_bounds = array<i64: 24, 1>}, {pipeline_mode = #tpu.pipeline_mode<synchronous>, transform_indices = @transform_6, window_bounds = array<i64: 24, 1>}, {pipeline_mode = #tpu.pipeline_mode<synchronous>, transform_indices = @transform_7, window_bounds = array<i64: 4, 24>}, {pipeline_mode = #tpu.pipeline_mode<synchronous>, transform_indices = @transform_8, window_bounds = array<i64: 4, 1>}, {pipeline_mode = #tpu.pipeline_mode<synchronous>, transform_indices = @transform_9, window_bounds = array<i64: 4, 1>}, {transform_indices = @transform_10, window_bounds = array<i64: 2, 4, 256>}]} {
    %c0 = arith.constant 0 : index
    %c0_0 = arith.constant 0 : index
    %0 = vector.load %arg2[%c0, %c0_0] : memref<24x4xf32, #tpu.memory_space<vmem>>, vector<24x4xf32>
    %c0_1 = arith.constant 0 : index
    %c0_2 = arith.constant 0 : index
    %1 = vector.load %arg3[%c0_1, %c0_2] : memref<24x1xf32, #tpu.memory_space<vmem>>, vector<24x1xf32>
    %c0_3 = arith.constant 0 : index
    %c0_4 = arith.constant 0 : index
    %2 = vector.load %arg4[%c0_3, %c0_4] : memref<24x1xf32, #tpu.memory_space<vmem>>, vector<24x1xf32>
    %c0_5 = arith.constant 0 : index
    %c0_6 = arith.constant 0 : index
    %3 = vector.load %arg5[%c0_5, %c0_6] : memref<24x9xf32, #tpu.memory_space<vmem>>, vector<24x9xf32>
    %c0_7 = arith.constant 0 : index
    %c0_8 = arith.constant 0 : index
    %4 = vector.load %arg6[%c0_7, %c0_8] : memref<24x1xf32, #tpu.memory_space<vmem>>, vector<24x1xf32>
    %c0_9 = arith.constant 0 : index
    %c0_10 = arith.constant 0 : index
    %5 = vector.load %arg7[%c0_9, %c0_10] : memref<24x1xf32, #tpu.memory_space<vmem>>, vector<24x1xf32>
    %c0_11 = arith.constant 0 : index
    %c0_12 = arith.constant 0 : index
    %6 = vector.load %arg8[%c0_11, %c0_12] : memref<4x24xf32, #tpu.memory_space<vmem>>, vector<4x24xf32>
    %c0_13 = arith.constant 0 : index
    %c0_14 = arith.constant 0 : index
    %7 = vector.load %arg9[%c0_13, %c0_14] : memref<4x1xf32, #tpu.memory_space<vmem>>, vector<4x1xf32>
    %c0_15 = arith.constant 0 : index
    %c0_16 = arith.constant 0 : index
    %8 = vector.load %arg10[%c0_15, %c0_16] : memref<4x1xf32, #tpu.memory_space<vmem>>, vector<4x1xf32>
    %9 = tpu.iota {dimensions = array<i32: 1>} : vector<1x256xi32>
    %c16_i32 = arith.constant 16 : i32
    %c0_i32 = arith.constant 0 : i32
    %10 = arith.cmpi eq, %c16_i32, %c0_i32 : i32
    %c1_i32 = arith.constant 1 : i32
    %11 = arith.select %10, %c1_i32, %c16_i32 : i32
    %12 = vector.broadcast %11 : i32 to vector<1x256xi32>
    %13 = arith.remsi %9, %12 : vector<1x256xi32>
    %c0_i32_17 = arith.constant 0 : i32
    %14 = vector.broadcast %c0_i32_17 : i32 to vector<1x256xi32>
    %15 = arith.cmpi ne, %13, %14 : vector<1x256xi32>
    %c0_i32_18 = arith.constant 0 : i32
    %16 = vector.broadcast %c0_i32_18 : i32 to vector<1x256xi32>
    %17 = arith.cmpi slt, %13, %16 : vector<1x256xi32>
    %c0_i32_19 = arith.constant 0 : i32
    %18 = arith.cmpi slt, %11, %c0_i32_19 : i32
    %19 = vector.broadcast %18 : i1 to vector<1x256xi1>
    %20 = vector.broadcast %19 : vector<1x256xi1> to vector<1x256xi1>
    %21 = arith.xori %17, %20 : vector<1x256xi1>
    %22 = arith.andi %21, %15 : vector<1x256xi1>
    %23 = vector.broadcast %11 : i32 to vector<1x256xi32>
    %24 = arith.addi %13, %23 : vector<1x256xi32>
    %25 = arith.select %22, %24, %13 : vector<1x256xi1>, vector<1x256xi32>
    %cst = arith.constant 1.000000e+00 : f32
    %26 = vector.broadcast %cst : f32 to vector<1x256xf32>
    %c16_i32_20 = arith.constant 16 : i32
    %27 = vector.broadcast %c16_i32_20 : i32 to vector<1x256xi32>
    %28 = arith.cmpi sge, %9, %27 : vector<1x256xi32>
    %29 = arith.extui %28 : vector<1x256xi1> to vector<1x256xi32>
    %30 = arith.sitofp %29 : vector<1x256xi32> to vector<1x256xf32>
    %c240_i32 = arith.constant 240 : i32
    %31 = vector.broadcast %c240_i32 : i32 to vector<1x256xi32>
    %32 = arith.cmpi slt, %9, %31 : vector<1x256xi32>
    %33 = arith.extui %32 : vector<1x256xi1> to vector<1x256xi32>
    %34 = arith.sitofp %33 : vector<1x256xi32> to vector<1x256xf32>
    %c1_i32_21 = arith.constant 1 : i32
    %35 = vector.broadcast %c1_i32_21 : i32 to vector<1x256xi32>
    %36 = arith.cmpi sge, %25, %35 : vector<1x256xi32>
    %37 = arith.extui %36 : vector<1x256xi1> to vector<1x256xi32>
    %38 = arith.sitofp %37 : vector<1x256xi32> to vector<1x256xf32>
    %c15_i32 = arith.constant 15 : i32
    %39 = vector.broadcast %c15_i32 : i32 to vector<1x256xi32>
    %40 = arith.cmpi slt, %25, %39 : vector<1x256xi32>
    %41 = arith.extui %40 : vector<1x256xi1> to vector<1x256xi32>
    %42 = arith.sitofp %41 : vector<1x256xi32> to vector<1x256xf32>
    %43 = arith.mulf %30, %38 : vector<1x256xf32>
    %44 = arith.mulf %30, %26 : vector<1x256xf32>
    %45 = arith.mulf %30, %42 : vector<1x256xf32>
    %46 = arith.mulf %26, %38 : vector<1x256xf32>
    %47 = arith.mulf %26, %42 : vector<1x256xf32>
    %48 = arith.mulf %34, %38 : vector<1x256xf32>
    %49 = arith.mulf %34, %26 : vector<1x256xf32>
    %50 = arith.mulf %34, %42 : vector<1x256xf32>
    %c0_22 = arith.constant 0 : index
    %c0_23 = arith.constant 0 : index
    %c0_24 = arith.constant 0 : index
    %51 = vector.load %arg1[%c0_22, %c0_23, %c0_24] : memref<2x4x256xf32, #tpu.memory_space<vmem>>, vector<1x4x256xf32>
    %52 = vector.shape_cast %51 : vector<1x4x256xf32> to vector<4x256xf32>
    %cst_25 = arith.constant 0.000000e+00 : f32
    %53 = vector.broadcast %cst_25 : f32 to vector<24x256xf32>
    %54 = vector.extract_strided_slice %0 {offsets = [0, 0], sizes = [24, 1], strides = [1, 1]} : vector<24x4xf32> to vector<24x1xf32>
    %55 = vector.extract_strided_slice %52 {offsets = [0, 0], sizes = [1, 256], strides = [1, 1]} : vector<4x256xf32> to vector<1x256xf32>
    %56 = vector.broadcast %54 : vector<24x1xf32> to vector<24x256xf32>
    %57 = vector.broadcast %55 : vector<1x256xf32> to vector<24x256xf32>
    %58 = arith.mulf %56, %57 : vector<24x256xf32>
    %59 = arith.addf %53, %58 : vector<24x256xf32>
    %60 = vector.extract_strided_slice %0 {offsets = [0, 1], sizes = [24, 1], strides = [1, 1]} : vector<24x4xf32> to vector<24x1xf32>
    %61 = vector.extract_strided_slice %52 {offsets = [1, 0], sizes = [1, 256], strides = [1, 1]} : vector<4x256xf32> to vector<1x256xf32>
    %62 = vector.broadcast %60 : vector<24x1xf32> to vector<24x256xf32>
    %63 = vector.broadcast %61 : vector<1x256xf32> to vector<24x256xf32>
    %64 = arith.mulf %62, %63 : vector<24x256xf32>
    %65 = arith.addf %59, %64 : vector<24x256xf32>
    %66 = vector.extract_strided_slice %0 {offsets = [0, 2], sizes = [24, 1], strides = [1, 1]} : vector<24x4xf32> to vector<24x1xf32>
    %67 = vector.extract_strided_slice %52 {offsets = [2, 0], sizes = [1, 256], strides = [1, 1]} : vector<4x256xf32> to vector<1x256xf32>
    %68 = vector.broadcast %66 : vector<24x1xf32> to vector<24x256xf32>
    %69 = vector.broadcast %67 : vector<1x256xf32> to vector<24x256xf32>
    %70 = arith.mulf %68, %69 : vector<24x256xf32>
    %71 = arith.addf %65, %70 : vector<24x256xf32>
    %72 = vector.extract_strided_slice %0 {offsets = [0, 3], sizes = [24, 1], strides = [1, 1]} : vector<24x4xf32> to vector<24x1xf32>
    %73 = vector.extract_strided_slice %52 {offsets = [3, 0], sizes = [1, 256], strides = [1, 1]} : vector<4x256xf32> to vector<1x256xf32>
    %74 = vector.broadcast %72 : vector<24x1xf32> to vector<24x256xf32>
    %75 = vector.broadcast %73 : vector<1x256xf32> to vector<24x256xf32>
    %76 = arith.mulf %74, %75 : vector<24x256xf32>
    %77 = arith.addf %71, %76 : vector<24x256xf32>
    %78 = vector.broadcast %1 : vector<24x1xf32> to vector<24x256xf32>
    %79 = arith.mulf %77, %78 : vector<24x256xf32>
    %80 = vector.broadcast %2 : vector<24x1xf32> to vector<24x256xf32>
    %81 = arith.addf %79, %80 : vector<24x256xf32>
    %cst_26 = arith.constant 0.000000e+00 : f32
    %cst_27 = arith.constant 6.000000e+00 : f32
    %82 = vector.broadcast %cst_26 : f32 to vector<24x256xf32>
    %83 = arith.maximumf %82, %81 : vector<24x256xf32>
    %84 = vector.broadcast %cst_27 : f32 to vector<24x256xf32>
    %85 = arith.minimumf %84, %83 : vector<24x256xf32>
    %cst_28 = arith.constant 0.000000e+00 : f32
    %86 = vector.broadcast %cst_28 : f32 to vector<24x256xf32>
    %c17_i32 = arith.constant 17 : i32
    %87 = tpu.dynamic_rotate %85 by %c17_i32 dim 1 : vector<24x256xf32>, i32 -> vector<24x256xf32>
    %88 = vector.broadcast %43 : vector<1x256xf32> to vector<24x256xf32>
    %89 = arith.mulf %87, %88 : vector<24x256xf32>
    %90 = vector.extract_strided_slice %3 {offsets = [0, 0], sizes = [24, 1], strides = [1, 1]} : vector<24x9xf32> to vector<24x1xf32>
    %91 = vector.broadcast %90 : vector<24x1xf32> to vector<24x256xf32>
    %92 = arith.mulf %89, %91 : vector<24x256xf32>
    %93 = arith.addf %86, %92 : vector<24x256xf32>
    %c16_i32_29 = arith.constant 16 : i32
    %94 = tpu.dynamic_rotate %85 by %c16_i32_29 dim 1 : vector<24x256xf32>, i32 -> vector<24x256xf32>
    %95 = vector.broadcast %44 : vector<1x256xf32> to vector<24x256xf32>
    %96 = arith.mulf %94, %95 : vector<24x256xf32>
    %97 = vector.extract_strided_slice %3 {offsets = [0, 1], sizes = [24, 1], strides = [1, 1]} : vector<24x9xf32> to vector<24x1xf32>
    %98 = vector.broadcast %97 : vector<24x1xf32> to vector<24x256xf32>
    %99 = arith.mulf %96, %98 : vector<24x256xf32>
    %100 = arith.addf %93, %99 : vector<24x256xf32>
    %c15_i32_30 = arith.constant 15 : i32
    %101 = tpu.dynamic_rotate %85 by %c15_i32_30 dim 1 : vector<24x256xf32>, i32 -> vector<24x256xf32>
    %102 = vector.broadcast %45 : vector<1x256xf32> to vector<24x256xf32>
    %103 = arith.mulf %101, %102 : vector<24x256xf32>
    %104 = vector.extract_strided_slice %3 {offsets = [0, 2], sizes = [24, 1], strides = [1, 1]} : vector<24x9xf32> to vector<24x1xf32>
    %105 = vector.broadcast %104 : vector<24x1xf32> to vector<24x256xf32>
    %106 = arith.mulf %103, %105 : vector<24x256xf32>
    %107 = arith.addf %100, %106 : vector<24x256xf32>
    %c1_i32_31 = arith.constant 1 : i32
    %108 = tpu.dynamic_rotate %85 by %c1_i32_31 dim 1 : vector<24x256xf32>, i32 -> vector<24x256xf32>
    %109 = vector.broadcast %46 : vector<1x256xf32> to vector<24x256xf32>
    %110 = arith.mulf %108, %109 : vector<24x256xf32>
    %111 = vector.extract_strided_slice %3 {offsets = [0, 3], sizes = [24, 1], strides = [1, 1]} : vector<24x9xf32> to vector<24x1xf32>
    %112 = vector.broadcast %111 : vector<24x1xf32> to vector<24x256xf32>
    %113 = arith.mulf %110, %112 : vector<24x256xf32>
    %114 = arith.addf %107, %113 : vector<24x256xf32>
    %115 = vector.extract_strided_slice %3 {offsets = [0, 4], sizes = [24, 1], strides = [1, 1]} : vector<24x9xf32> to vector<24x1xf32>
    %116 = vector.broadcast %115 : vector<24x1xf32> to vector<24x256xf32>
    %117 = arith.mulf %85, %116 : vector<24x256xf32>
    %118 = arith.addf %114, %117 : vector<24x256xf32>
    %c255_i32 = arith.constant 255 : i32
    %119 = tpu.dynamic_rotate %85 by %c255_i32 dim 1 : vector<24x256xf32>, i32 -> vector<24x256xf32>
    %120 = vector.broadcast %47 : vector<1x256xf32> to vector<24x256xf32>
    %121 = arith.mulf %119, %120 : vector<24x256xf32>
    %122 = vector.extract_strided_slice %3 {offsets = [0, 5], sizes = [24, 1], strides = [1, 1]} : vector<24x9xf32> to vector<24x1xf32>
    %123 = vector.broadcast %122 : vector<24x1xf32> to vector<24x256xf32>
    %124 = arith.mulf %121, %123 : vector<24x256xf32>
    %125 = arith.addf %118, %124 : vector<24x256xf32>
    %c241_i32 = arith.constant 241 : i32
    %126 = tpu.dynamic_rotate %85 by %c241_i32 dim 1 : vector<24x256xf32>, i32 -> vector<24x256xf32>
    %127 = vector.broadcast %48 : vector<1x256xf32> to vector<24x256xf32>
    %128 = arith.mulf %126, %127 : vector<24x256xf32>
    %129 = vector.extract_strided_slice %3 {offsets = [0, 6], sizes = [24, 1], strides = [1, 1]} : vector<24x9xf32> to vector<24x1xf32>
    %130 = vector.broadcast %129 : vector<24x1xf32> to vector<24x256xf32>
    %131 = arith.mulf %128, %130 : vector<24x256xf32>
    %132 = arith.addf %125, %131 : vector<24x256xf32>
    %c240_i32_32 = arith.constant 240 : i32
    %133 = tpu.dynamic_rotate %85 by %c240_i32_32 dim 1 : vector<24x256xf32>, i32 -> vector<24x256xf32>
    %134 = vector.broadcast %49 : vector<1x256xf32> to vector<24x256xf32>
    %135 = arith.mulf %133, %134 : vector<24x256xf32>
    %136 = vector.extract_strided_slice %3 {offsets = [0, 7], sizes = [24, 1], strides = [1, 1]} : vector<24x9xf32> to vector<24x1xf32>
    %137 = vector.broadcast %136 : vector<24x1xf32> to vector<24x256xf32>
    %138 = arith.mulf %135, %137 : vector<24x256xf32>
    %139 = arith.addf %132, %138 : vector<24x256xf32>
    %c239_i32 = arith.constant 239 : i32
    %140 = tpu.dynamic_rotate %85 by %c239_i32 dim 1 : vector<24x256xf32>, i32 -> vector<24x256xf32>
    %141 = vector.broadcast %50 : vector<1x256xf32> to vector<24x256xf32>
    %142 = arith.mulf %140, %141 : vector<24x256xf32>
    %143 = vector.extract_strided_slice %3 {offsets = [0, 8], sizes = [24, 1], strides = [1, 1]} : vector<24x9xf32> to vector<24x1xf32>
    %144 = vector.broadcast %143 : vector<24x1xf32> to vector<24x256xf32>
    %145 = arith.mulf %142, %144 : vector<24x256xf32>
    %146 = arith.addf %139, %145 : vector<24x256xf32>
    %147 = vector.broadcast %4 : vector<24x1xf32> to vector<24x256xf32>
    %148 = arith.mulf %146, %147 : vector<24x256xf32>
    %149 = vector.broadcast %5 : vector<24x1xf32> to vector<24x256xf32>
    %150 = arith.addf %148, %149 : vector<24x256xf32>
    %cst_33 = arith.constant 0.000000e+00 : f32
    %cst_34 = arith.constant 6.000000e+00 : f32
    %151 = vector.broadcast %cst_33 : f32 to vector<24x256xf32>
    %152 = arith.maximumf %151, %150 : vector<24x256xf32>
    %153 = vector.broadcast %cst_34 : f32 to vector<24x256xf32>
    %154 = arith.minimumf %153, %152 : vector<24x256xf32>
    %cst_35 = arith.constant dense<0.000000e+00> : vector<4x256xf32>
    %155 = tpu.matmul %6, %154, %cst_35 {dimension_numbers = #tpu.dot_dimension_numbers<[1], [0], [0], [1], [0, 0, 1, 1], [], []>} : vector<4x24xf32>, vector<24x256xf32>, vector<4x256xf32> -> vector<4x256xf32>
    %156 = vector.broadcast %7 : vector<4x1xf32> to vector<4x256xf32>
    %157 = arith.mulf %155, %156 : vector<4x256xf32>
    %158 = vector.broadcast %8 : vector<4x1xf32> to vector<4x256xf32>
    %159 = arith.addf %157, %158 : vector<4x256xf32>
    %160 = arith.addf %159, %52 : vector<4x256xf32>
    %c0_36 = arith.constant 0 : index
    %c0_37 = arith.constant 0 : index
    %c0_38 = arith.constant 0 : index
    %161 = vector.load %arg11[%c0_36, %c0_37, %c0_38] : memref<2x4x256xf32, #tpu.memory_space<vmem>>, vector<1x4x256xf32>
    %162 = vector.shape_cast %161 : vector<1x4x256xf32> to vector<4x256xf32>
    %163 = vector.shape_cast %160 : vector<4x256xf32> to vector<1x4x256xf32>
    tpu.vector_store %arg11[%c0_36, %c0_37, %c0_38], %163 {strides = array<i32>} : memref<2x4x256xf32, #tpu.memory_space<vmem>>, vector<1x4x256xf32>,
    %c1 = arith.constant 1 : index
    %c0_39 = arith.constant 0 : index
    %c0_40 = arith.constant 0 : index
    %164 = vector.load %arg1[%c1, %c0_39, %c0_40] : memref<2x4x256xf32, #tpu.memory_space<vmem>>, vector<1x4x256xf32>
    %165 = vector.shape_cast %164 : vector<1x4x256xf32> to vector<4x256xf32>
    %cst_41 = arith.constant 0.000000e+00 : f32
    %166 = vector.broadcast %cst_41 : f32 to vector<24x256xf32>
    %167 = vector.extract_strided_slice %0 {offsets = [0, 0], sizes = [24, 1], strides = [1, 1]} : vector<24x4xf32> to vector<24x1xf32>
    %168 = vector.extract_strided_slice %165 {offsets = [0, 0], sizes = [1, 256], strides = [1, 1]} : vector<4x256xf32> to vector<1x256xf32>
    %169 = vector.broadcast %167 : vector<24x1xf32> to vector<24x256xf32>
    %170 = vector.broadcast %168 : vector<1x256xf32> to vector<24x256xf32>
    %171 = arith.mulf %169, %170 : vector<24x256xf32>
    %172 = arith.addf %166, %171 : vector<24x256xf32>
    %173 = vector.extract_strided_slice %0 {offsets = [0, 1], sizes = [24, 1], strides = [1, 1]} : vector<24x4xf32> to vector<24x1xf32>
    %174 = vector.extract_strided_slice %165 {offsets = [1, 0], sizes = [1, 256], strides = [1, 1]} : vector<4x256xf32> to vector<1x256xf32>
    %175 = vector.broadcast %173 : vector<24x1xf32> to vector<24x256xf32>
    %176 = vector.broadcast %174 : vector<1x256xf32> to vector<24x256xf32>
    %177 = arith.mulf %175, %176 : vector<24x256xf32>
    %178 = arith.addf %172, %177 : vector<24x256xf32>
    %179 = vector.extract_strided_slice %0 {offsets = [0, 2], sizes = [24, 1], strides = [1, 1]} : vector<24x4xf32> to vector<24x1xf32>
    %180 = vector.extract_strided_slice %165 {offsets = [2, 0], sizes = [1, 256], strides = [1, 1]} : vector<4x256xf32> to vector<1x256xf32>
    %181 = vector.broadcast %179 : vector<24x1xf32> to vector<24x256xf32>
    %182 = vector.broadcast %180 : vector<1x256xf32> to vector<24x256xf32>
    %183 = arith.mulf %181, %182 : vector<24x256xf32>
    %184 = arith.addf %178, %183 : vector<24x256xf32>
    %185 = vector.extract_strided_slice %0 {offsets = [0, 3], sizes = [24, 1], strides = [1, 1]} : vector<24x4xf32> to vector<24x1xf32>
    %186 = vector.extract_strided_slice %165 {offsets = [3, 0], sizes = [1, 256], strides = [1, 1]} : vector<4x256xf32> to vector<1x256xf32>
    %187 = vector.broadcast %185 : vector<24x1xf32> to vector<24x256xf32>
    %188 = vector.broadcast %186 : vector<1x256xf32> to vector<24x256xf32>
    %189 = arith.mulf %187, %188 : vector<24x256xf32>
    %190 = arith.addf %184, %189 : vector<24x256xf32>
    %191 = vector.broadcast %1 : vector<24x1xf32> to vector<24x256xf32>
    %192 = arith.mulf %190, %191 : vector<24x256xf32>
    %193 = vector.broadcast %2 : vector<24x1xf32> to vector<24x256xf32>
    %194 = arith.addf %192, %193 : vector<24x256xf32>
    %cst_42 = arith.constant 0.000000e+00 : f32
    %cst_43 = arith.constant 6.000000e+00 : f32
    %195 = vector.broadcast %cst_42 : f32 to vector<24x256xf32>
    %196 = arith.maximumf %195, %194 : vector<24x256xf32>
    %197 = vector.broadcast %cst_43 : f32 to vector<24x256xf32>
    %198 = arith.minimumf %197, %196 : vector<24x256xf32>
    %cst_44 = arith.constant 0.000000e+00 : f32
    %199 = vector.broadcast %cst_44 : f32 to vector<24x256xf32>
    %c17_i32_45 = arith.constant 17 : i32
    %200 = tpu.dynamic_rotate %198 by %c17_i32_45 dim 1 : vector<24x256xf32>, i32 -> vector<24x256xf32>
    %201 = vector.broadcast %43 : vector<1x256xf32> to vector<24x256xf32>
    %202 = arith.mulf %200, %201 : vector<24x256xf32>
    %203 = vector.extract_strided_slice %3 {offsets = [0, 0], sizes = [24, 1], strides = [1, 1]} : vector<24x9xf32> to vector<24x1xf32>
    %204 = vector.broadcast %203 : vector<24x1xf32> to vector<24x256xf32>
    %205 = arith.mulf %202, %204 : vector<24x256xf32>
    %206 = arith.addf %199, %205 : vector<24x256xf32>
    %c16_i32_46 = arith.constant 16 : i32
    %207 = tpu.dynamic_rotate %198 by %c16_i32_46 dim 1 : vector<24x256xf32>, i32 -> vector<24x256xf32>
    %208 = vector.broadcast %44 : vector<1x256xf32> to vector<24x256xf32>
    %209 = arith.mulf %207, %208 : vector<24x256xf32>
    %210 = vector.extract_strided_slice %3 {offsets = [0, 1], sizes = [24, 1], strides = [1, 1]} : vector<24x9xf32> to vector<24x1xf32>
    %211 = vector.broadcast %210 : vector<24x1xf32> to vector<24x256xf32>
    %212 = arith.mulf %209, %211 : vector<24x256xf32>
    %213 = arith.addf %206, %212 : vector<24x256xf32>
    %c15_i32_47 = arith.constant 15 : i32
    %214 = tpu.dynamic_rotate %198 by %c15_i32_47 dim 1 : vector<24x256xf32>, i32 -> vector<24x256xf32>
    %215 = vector.broadcast %45 : vector<1x256xf32> to vector<24x256xf32>
    %216 = arith.mulf %214, %215 : vector<24x256xf32>
    %217 = vector.extract_strided_slice %3 {offsets = [0, 2], sizes = [24, 1], strides = [1, 1]} : vector<24x9xf32> to vector<24x1xf32>
    %218 = vector.broadcast %217 : vector<24x1xf32> to vector<24x256xf32>
    %219 = arith.mulf %216, %218 : vector<24x256xf32>
    %220 = arith.addf %213, %219 : vector<24x256xf32>
    %c1_i32_48 = arith.constant 1 : i32
    %221 = tpu.dynamic_rotate %198 by %c1_i32_48 dim 1 : vector<24x256xf32>, i32 -> vector<24x256xf32>
    %222 = vector.broadcast %46 : vector<1x256xf32> to vector<24x256xf32>
    %223 = arith.mulf %221, %222 : vector<24x256xf32>
    %224 = vector.extract_strided_slice %3 {offsets = [0, 3], sizes = [24, 1], strides = [1, 1]} : vector<24x9xf32> to vector<24x1xf32>
    %225 = vector.broadcast %224 : vector<24x1xf32> to vector<24x256xf32>
    %226 = arith.mulf %223, %225 : vector<24x256xf32>
    %227 = arith.addf %220, %226 : vector<24x256xf32>
    %228 = vector.extract_strided_slice %3 {offsets = [0, 4], sizes = [24, 1], strides = [1, 1]} : vector<24x9xf32> to vector<24x1xf32>
    %229 = vector.broadcast %228 : vector<24x1xf32> to vector<24x256xf32>
    %230 = arith.mulf %198, %229 : vector<24x256xf32>
    %231 = arith.addf %227, %230 : vector<24x256xf32>
    %c255_i32_49 = arith.constant 255 : i32
    %232 = tpu.dynamic_rotate %198 by %c255_i32_49 dim 1 : vector<24x256xf32>, i32 -> vector<24x256xf32>
    %233 = vector.broadcast %47 : vector<1x256xf32> to vector<24x256xf32>
    %234 = arith.mulf %232, %233 : vector<24x256xf32>
    %235 = vector.extract_strided_slice %3 {offsets = [0, 5], sizes = [24, 1], strides = [1, 1]} : vector<24x9xf32> to vector<24x1xf32>
    %236 = vector.broadcast %235 : vector<24x1xf32> to vector<24x256xf32>
    %237 = arith.mulf %234, %236 : vector<24x256xf32>
    %238 = arith.addf %231, %237 : vector<24x256xf32>
    %c241_i32_50 = arith.constant 241 : i32
    %239 = tpu.dynamic_rotate %198 by %c241_i32_50 dim 1 : vector<24x256xf32>, i32 -> vector<24x256xf32>
    %240 = vector.broadcast %48 : vector<1x256xf32> to vector<24x256xf32>
    %241 = arith.mulf %239, %240 : vector<24x256xf32>
    %242 = vector.extract_strided_slice %3 {offsets = [0, 6], sizes = [24, 1], strides = [1, 1]} : vector<24x9xf32> to vector<24x1xf32>
    %243 = vector.broadcast %242 : vector<24x1xf32> to vector<24x256xf32>
    %244 = arith.mulf %241, %243 : vector<24x256xf32>
    %245 = arith.addf %238, %244 : vector<24x256xf32>
    %c240_i32_51 = arith.constant 240 : i32
    %246 = tpu.dynamic_rotate %198 by %c240_i32_51 dim 1 : vector<24x256xf32>, i32 -> vector<24x256xf32>
    %247 = vector.broadcast %49 : vector<1x256xf32> to vector<24x256xf32>
    %248 = arith.mulf %246, %247 : vector<24x256xf32>
    %249 = vector.extract_strided_slice %3 {offsets = [0, 7], sizes = [24, 1], strides = [1, 1]} : vector<24x9xf32> to vector<24x1xf32>
    %250 = vector.broadcast %249 : vector<24x1xf32> to vector<24x256xf32>
    %251 = arith.mulf %248, %250 : vector<24x256xf32>
    %252 = arith.addf %245, %251 : vector<24x256xf32>
    %c239_i32_52 = arith.constant 239 : i32
    %253 = tpu.dynamic_rotate %198 by %c239_i32_52 dim 1 : vector<24x256xf32>, i32 -> vector<24x256xf32>
    %254 = vector.broadcast %50 : vector<1x256xf32> to vector<24x256xf32>
    %255 = arith.mulf %253, %254 : vector<24x256xf32>
    %256 = vector.extract_strided_slice %3 {offsets = [0, 8], sizes = [24, 1], strides = [1, 1]} : vector<24x9xf32> to vector<24x1xf32>
    %257 = vector.broadcast %256 : vector<24x1xf32> to vector<24x256xf32>
    %258 = arith.mulf %255, %257 : vector<24x256xf32>
    %259 = arith.addf %252, %258 : vector<24x256xf32>
    %260 = vector.broadcast %4 : vector<24x1xf32> to vector<24x256xf32>
    %261 = arith.mulf %259, %260 : vector<24x256xf32>
    %262 = vector.broadcast %5 : vector<24x1xf32> to vector<24x256xf32>
    %263 = arith.addf %261, %262 : vector<24x256xf32>
    %cst_53 = arith.constant 0.000000e+00 : f32
    %cst_54 = arith.constant 6.000000e+00 : f32
    %264 = vector.broadcast %cst_53 : f32 to vector<24x256xf32>
    %265 = arith.maximumf %264, %263 : vector<24x256xf32>
    %266 = vector.broadcast %cst_54 : f32 to vector<24x256xf32>
    %267 = arith.minimumf %266, %265 : vector<24x256xf32>
    %cst_55 = arith.constant dense<0.000000e+00> : vector<4x256xf32>
    %268 = tpu.matmul %6, %267, %cst_55 {dimension_numbers = #tpu.dot_dimension_numbers<[1], [0], [0], [1], [0, 0, 1, 1], [], []>} : vector<4x24xf32>, vector<24x256xf32>, vector<4x256xf32> -> vector<4x256xf32>
    %269 = vector.broadcast %7 : vector<4x1xf32> to vector<4x256xf32>
    %270 = arith.mulf %268, %269 : vector<4x256xf32>
    %271 = vector.broadcast %8 : vector<4x1xf32> to vector<4x256xf32>
    %272 = arith.addf %270, %271 : vector<4x256xf32>
    %273 = arith.addf %272, %165 : vector<4x256xf32>
    %c1_56 = arith.constant 1 : index
    %c0_57 = arith.constant 0 : index
    %c0_58 = arith.constant 0 : index
    %274 = vector.load %arg11[%c1_56, %c0_57, %c0_58] : memref<2x4x256xf32, #tpu.memory_space<vmem>>, vector<1x4x256xf32>
    %275 = vector.shape_cast %274 : vector<1x4x256xf32> to vector<4x256xf32>
    %276 = vector.shape_cast %273 : vector<4x256xf32> to vector<1x4x256xf32>
    tpu.vector_store %arg11[%c1_56, %c0_57, %c0_58], %276 {strides = array<i32>} : memref<2x4x256xf32, #tpu.memory_space<vmem>>, vector<1x4x256xf32>,
    return
  }
  func.func @transform_0(%arg0: i32) -> (i32, i32, i32) {
    %c0_i32 = arith.constant 0 : i32
    %c0_i32_0 = arith.constant 0 : i32
    %c0_i32_1 = arith.constant 0 : i32
    return %arg0, %c0_i32, %c0_i32_0 : i32, i32, i32
  }
  func.func @transform_1(%arg0: i32) -> (i32, i32) {
    %c0_i32 = arith.constant 0 : i32
    %c0_i32_0 = arith.constant 0 : i32
    %c0_i32_1 = arith.constant 0 : i32
    return %c0_i32, %c0_i32_0 : i32, i32
  }
  func.func @transform_2(%arg0: i32) -> (i32, i32) {
    %c0_i32 = arith.constant 0 : i32
    %c0_i32_0 = arith.constant 0 : i32
    %c0_i32_1 = arith.constant 0 : i32
    return %c0_i32, %c0_i32_0 : i32, i32
  }
  func.func @transform_3(%arg0: i32) -> (i32, i32) {
    %c0_i32 = arith.constant 0 : i32
    %c0_i32_0 = arith.constant 0 : i32
    %c0_i32_1 = arith.constant 0 : i32
    return %c0_i32, %c0_i32_0 : i32, i32
  }
  func.func @transform_4(%arg0: i32) -> (i32, i32) {
    %c0_i32 = arith.constant 0 : i32
    %c0_i32_0 = arith.constant 0 : i32
    %c0_i32_1 = arith.constant 0 : i32
    return %c0_i32, %c0_i32_0 : i32, i32
  }
  func.func @transform_5(%arg0: i32) -> (i32, i32) {
    %c0_i32 = arith.constant 0 : i32
    %c0_i32_0 = arith.constant 0 : i32
    %c0_i32_1 = arith.constant 0 : i32
    return %c0_i32, %c0_i32_0 : i32, i32
  }
  func.func @transform_6(%arg0: i32) -> (i32, i32) {
    %c0_i32 = arith.constant 0 : i32
    %c0_i32_0 = arith.constant 0 : i32
    %c0_i32_1 = arith.constant 0 : i32
    return %c0_i32, %c0_i32_0 : i32, i32
  }
  func.func @transform_7(%arg0: i32) -> (i32, i32) {
    %c0_i32 = arith.constant 0 : i32
    %c0_i32_0 = arith.constant 0 : i32
    %c0_i32_1 = arith.constant 0 : i32
    return %c0_i32, %c0_i32_0 : i32, i32
  }
  func.func @transform_8(%arg0: i32) -> (i32, i32) {
    %c0_i32 = arith.constant 0 : i32
    %c0_i32_0 = arith.constant 0 : i32
    %c0_i32_1 = arith.constant 0 : i32
    return %c0_i32, %c0_i32_0 : i32, i32
  }
  func.func @transform_9(%arg0: i32) -> (i32, i32) {
    %c0_i32 = arith.constant 0 : i32
    %c0_i32_0 = arith.constant 0 : i32
    %c0_i32_1 = arith.constant 0 : i32
    return %c0_i32, %c0_i32_0 : i32, i32
  }
  func.func @transform_10(%arg0: i32) -> (i32, i32, i32) {
    %c0_i32 = arith.constant 0 : i32
    %c0_i32_0 = arith.constant 0 : i32
    %c0_i32_1 = arith.constant 0 : i32
    return %arg0, %c0_i32, %c0_i32_0 : i32, i32, i32
  }
}

</mosaic_0001>

<llo_original>
// kernel: tpu_custom_call.1
$region0: #{tpu_custom_call.1}
  #allocation0 [shape = 'u32[]', space=smem, size = 0x4, offset = 0x4, fixed_abs, tag = 'smem constant byte address 0x4 - core index']
  #allocation1 [shape = 'u32[72,128]{1,0:T(1,128)}', space=vmem, size = 0x9000, scoped, tag = 'internal scratch']
  %s0 = inlined_call_operand.vmem [shape: f32[4,4,256], index: 0, kind: input, shape index: {}]
  %s1 = inlined_call_operand.vmem [shape: f32[24,4], index: 1, kind: input, shape index: {}]
  %s2 = inlined_call_operand.vmem [shape: f32[24,1], index: 2, kind: input, shape index: {}]
  %s3 = inlined_call_operand.vmem [shape: f32[24,1], index: 3, kind: input, shape index: {}]
  %s4 = inlined_call_operand.vmem [shape: f32[24,9], index: 4, kind: input, shape index: {}]
  %s5 = inlined_call_operand.vmem [shape: f32[24,1], index: 5, kind: input, shape index: {}]
  %s6 = inlined_call_operand.vmem [shape: f32[24,1], index: 6, kind: input, shape index: {}]
  %s7 = inlined_call_operand.vmem [shape: f32[4,24], index: 7, kind: input, shape index: {}]
  %s8 = inlined_call_operand.vmem [shape: f32[4,1], index: 8, kind: input, shape index: {}]
  %s9 = inlined_call_operand.vmem [shape: f32[4,1], index: 9, kind: input, shape index: {}]
  %s10 = inlined_call_operand.hbm [shape: f32[4,4,256], index: 10, kind: output, shape index: {}]
  %s11 = sld [smem:[#allocation0]]
  $region73: #{tpu_custom_call.1} parent=0
    _
  %s13 = ssub.s32 1, %s11
  %s14 = scalar_select 0, %s13, %s11
  $region1: #{tpu_custom_call.1} parent=0
    #allocation2 [shape = 'u8[16384]{0}', space=vmem, size = 0x4000, scoped, tag = 'output window, operand 0']
    #allocation3 [shape = 's32[2]{0}', space=sflag, size = 0x8, scoped, tag = 'scoped memory for tpu_custom_call.1']
    %15 = vsyncpa [#allocation3], 0
    %s16 = scalar_lea.sflag [#allocation3], 1
    %17 = vsyncpa %s16, 0
    loop: start=0, step=1, limit=4
    $region2: #{tpu_custom_call.1} parent=1 // loop_pre_header
      _
    $region3: #{tpu_custom_call.1} parent=1 // loop_header
      %s19 = sphi 0, %s23
      %p20 = scmp.ge.s32.totalorder %s19, 4
      %s29 = sphi 0, %s31
      %s32 = sphi 0, %s29
      %s33 = sphi 0, %s32
      %s49 = sphi 0, %s33
      %s53 = sphi 0, %s53
      %s55 = sphi 0, %s53
      %s56 = sphi 0, %s55
      %s70 = sphi 0, %s56
      %s74 = sphi 0, %s74
      %s76 = sphi 0, %s74
      %s77 = sphi 0, %s76
      %s91 = sphi 0, %s77
      %s95 = sphi 0, %s95
      %s97 = sphi 0, %s95
      %s98 = sphi 0, %s97
      %s112 = sphi 0, %s98
      %s116 = sphi 0, %s116
      %s118 = sphi 0, %s116
      %s119 = sphi 0, %s118
      %s133 = sphi 0, %s119
      %s137 = sphi 0, %s137
      %s139 = sphi 0, %s137
      %s140 = sphi 0, %s139
      %s154 = sphi 0, %s140
      %s158 = sphi 0, %s158
      %s160 = sphi 0, %s158
      %s161 = sphi 0, %s160
      %s175 = sphi 0, %s161
      %s179 = sphi 0, %s179
      %s181 = sphi 0, %s179
      %s182 = sphi 0, %s181
      %s196 = sphi 0, %s182
      %s200 = sphi 0, %s200
      %s202 = sphi 0, %s200
      %s203 = sphi 0, %s202
      %s217 = sphi 0, %s203
      %s221 = sphi 0, %s221
      %s223 = sphi 0, %s221
      %s224 = sphi 0, %s223
      %s238 = sphi 0, %s224
      %s244 = sphi 0, %s246
      %s247 = sphi 0, %s244
      %s248 = sphi 0, %s247
      %s264 = sphi 0, %s248
    $region4: #{tpu_custom_call.1} parent=1 // loop_header_branch
      %22 = sbr.rel (%p20) target = $region8
    $region5: #{tpu_custom_call.1} parent=1 // loop_body
      %s24 = ssub.s32 %s19, 1
      %s25 = ssub.s32 %s19, 2
      %s26 = sadd.s32 %s19, 1
      %s27 = ssub.s32 %s19, %s26
      %p28 = scmp.eq.s32.totalorder %s27, 0
      %s30 = sadd.s32 %s29, 1
      %s31 = scalar_select %p28, %s29, %s30
      %p34 = pneg %p28
      %p35 = scmp.eq.s32.totalorder %s19, 1
      %p36 = por %p34, %p35
      %p37 = scmp.ne.s32.totalorder %s29, %s32
      %p38 = scmp.eq.s32.totalorder %s19, 0
      %p39 = por %p37, %p38
      %p40 = scmp.ne.s32.totalorder %s29, %s32
      %p41 = scmp.eq.s32.totalorder %s24, 1
      %p42 = por %p40, %p41
      %p43 = scmp.ne.s32.totalorder %s32, %s33
      %p44 = scmp.eq.s32.totalorder %s24, 0
      %p45 = por %p43, %p44
      %p46 = scmp.ne.s32.totalorder %s32, %s33
      %p47 = scmp.eq.s32.totalorder %s25, 1
      %p48 = por %p46, %p47
      %p50 = scmp.ne.s32.totalorder %s33, %s49
      %p51 = scmp.eq.s32.totalorder %s25, 0
      %p52 = por %p50, %p51
      %s54 = sadd.s32 %s53, 1
      %p57 = scmp.eq.s32.totalorder %s19, 1
      %p58 = scmp.ne.s32.totalorder %s53, %s55
      %p59 = scmp.eq.s32.totalorder %s19, 0
      %p60 = por %p58, %p59
      %p61 = scmp.ne.s32.totalorder %s53, %s55
      %p62 = scmp.eq.s32.totalorder %s24, 1
      %p63 = por %p61, %p62
      %p64 = scmp.ne.s32.totalorder %s55, %s56
      %p65 = scmp.eq.s32.totalorder %s24, 0
      %p66 = por %p64, %p65
      %p67 = scmp.ne.s32.totalorder %s55, %s56
      %p68 = scmp.eq.s32.totalorder %s25, 1
      %p69 = por %p67, %p68
      %p71 = scmp.ne.s32.totalorder %s56, %s70
      %p72 = scmp.eq.s32.totalorder %s25, 0
      %p73 = por %p71, %p72
      %s75 = sadd.s32 %s74, 1
      %p78 = scmp.eq.s32.totalorder %s19, 1
      %p79 = scmp.ne.s32.totalorder %s74, %s76
      %p80 = scmp.eq.s32.totalorder %s19, 0
      %p81 = por %p79, %p80
      %p82 = scmp.ne.s32.totalorder %s74, %s76
      %p83 = scmp.eq.s32.totalorder %s24, 1
      %p84 = por %p82, %p83
      %p85 = scmp.ne.s32.totalorder %s76, %s77
      %p86 = scmp.eq.s32.totalorder %s24, 0
      %p87 = por %p85, %p86
      %p88 = scmp.ne.s32.totalorder %s76, %s77
      %p89 = scmp.eq.s32.totalorder %s25, 1
      %p90 = por %p88, %p89
      %p92 = scmp.ne.s32.totalorder %s77, %s91
      %p93 = scmp.eq.s32.totalorder %s25, 0
      %p94 = por %p92, %p93
      %s96 = sadd.s32 %s95, 1
      %p99 = scmp.eq.s32.totalorder %s19, 1
      %p100 = scmp.ne.s32.totalorder %s95, %s97
      %p101 = scmp.eq.s32.totalorder %s19, 0
      %p102 = por %p100, %p101
      %p103 = scmp.ne.s32.totalorder %s95, %s97
      %p104 = scmp.eq.s32.totalorder %s24, 1
      %p105 = por %p103, %p104
      %p106 = scmp.ne.s32.totalorder %s97, %s98
      %p107 = scmp.eq.s32.totalorder %s24, 0
      %p108 = por %p106, %p107
      %p109 = scmp.ne.s32.totalorder %s97, %s98
      %p110 = scmp.eq.s32.totalorder %s25, 1
      %p111 = por %p109, %p110
      %p113 = scmp.ne.s32.totalorder %s98, %s112
      %p114 = scmp.eq.s32.totalorder %s25, 0
      %p115 = por %p113, %p114
      %s117 = sadd.s32 %s116, 1
      %p120 = scmp.eq.s32.totalorder %s19, 1
      %p121 = scmp.ne.s32.totalorder %s116, %s118
      %p122 = scmp.eq.s32.totalorder %s19, 0
      %p123 = por %p121, %p122
      %p124 = scmp.ne.s32.totalorder %s116, %s118
      %p125 = scmp.eq.s32.totalorder %s24, 1
      %p126 = por %p124, %p125
      %p127 = scmp.ne.s32.totalorder %s118, %s119
      %p128 = scmp.eq.s32.totalorder %s24, 0
      %p129 = por %p127, %p128
      %p130 = scmp.ne.s32.totalorder %s118, %s119
      %p131 = scmp.eq.s32.totalorder %s25, 1
      %p132 = por %p130, %p131
      %p134 = scmp.ne.s32.totalorder %s119, %s133
      %p135 = scmp.eq.s32.totalorder %s25, 0
      %p136 = por %p134, %p135
      %s138 = sadd.s32 %s137, 1
      %p141 = scmp.eq.s32.totalorder %s19, 1
      %p142 = scmp.ne.s32.totalorder %s137, %s139
      %p143 = scmp.eq.s32.totalorder %s19, 0
      %p144 = por %p142, %p143
      %p145 = scmp.ne.s32.totalorder %s137, %s139
      %p146 = scmp.eq.s32.totalorder %s24, 1
      %p147 = por %p145, %p146
      %p148 = scmp.ne.s32.totalorder %s139, %s140
      %p149 = scmp.eq.s32.totalorder %s24, 0
      %p150 = por %p148, %p149
      %p151 = scmp.ne.s32.totalorder %s139, %s140
      %p152 = scmp.eq.s32.totalorder %s25, 1
      %p153 = por %p151, %p152
      %p155 = scmp.ne.s32.totalorder %s140, %s154
      %p156 = scmp.eq.s32.totalorder %s25, 0
      %p157 = por %p155, %p156
      %s159 = sadd.s32 %s158, 1
      %p162 = scmp.eq.s32.totalorder %s19, 1
      %p163 = scmp.ne.s32.totalorder %s158, %s160
      %p164 = scmp.eq.s32.totalorder %s19, 0
      %p165 = por %p163, %p164
      %p166 = scmp.ne.s32.totalorder %s158, %s160
      %p167 = scmp.eq.s32.totalorder %s24, 1
      %p168 = por %p166, %p167
      %p169 = scmp.ne.s32.totalorder %s160, %s161
      %p170 = scmp.eq.s32.totalorder %s24, 0
      %p171 = por %p169, %p170
      %p172 = scmp.ne.s32.totalorder %s160, %s161
      %p173 = scmp.eq.s32.totalorder %s25, 1
      %p174 = por %p172, %p173
      %p176 = scmp.ne.s32.totalorder %s161, %s175
      %p177 = scmp.eq.s32.totalorder %s25, 0
      %p178 = por %p176, %p177
      %s180 = sadd.s32 %s179, 1
      %p183 = scmp.eq.s32.totalorder %s19, 1
      %p184 = scmp.ne.s32.totalorder %s179, %s181
      %p185 = scmp.eq.s32.totalorder %s19, 0
      %p186 = por %p184, %p185
      %p187 = scmp.ne.s32.totalorder %s179, %s181
      %p188 = scmp.eq.s32.totalorder %s24, 1
      %p189 = por %p187, %p188
      %p190 = scmp.ne.s32.totalorder %s181, %s182
      %p191 = scmp.eq.s32.totalorder %s24, 0
      %p192 = por %p190, %p191
      %p193 = scmp.ne.s32.totalorder %s181, %s182
      %p194 = scmp.eq.s32.totalorder %s25, 1
      %p195 = por %p193, %p194
      %p197 = scmp.ne.s32.totalorder %s182, %s196
      %p198 = scmp.eq.s32.totalorder %s25, 0
      %p199 = por %p197, %p198
      %s201 = sadd.s32 %s200, 1
      %p204 = scmp.eq.s32.totalorder %s19, 1
      %p205 = scmp.ne.s32.totalorder %s200, %s202
      %p206 = scmp.eq.s32.totalorder %s19, 0
      %p207 = por %p205, %p206
      %p208 = scmp.ne.s32.totalorder %s200, %s202
      %p209 = scmp.eq.s32.totalorder %s24, 1
      %p210 = por %p208, %p209
      %p211 = scmp.ne.s32.totalorder %s202, %s203
      %p212 = scmp.eq.s32.totalorder %s24, 0
      %p213 = por %p211, %p212
      %p214 = scmp.ne.s32.totalorder %s202, %s203
      %p215 = scmp.eq.s32.totalorder %s25, 1
      %p216 = por %p214, %p215
      %p218 = scmp.ne.s32.totalorder %s203, %s217
      %p219 = scmp.eq.s32.totalorder %s25, 0
      %p220 = por %p218, %p219
      %s222 = sadd.s32 %s221, 1
      %p225 = scmp.eq.s32.totalorder %s19, 1
      %p226 = scmp.ne.s32.totalorder %s221, %s223
      %p227 = scmp.eq.s32.totalorder %s19, 0
      %p228 = por %p226, %p227
      %p229 = scmp.ne.s32.totalorder %s221, %s223
      %p230 = scmp.eq.s32.totalorder %s24, 1
      %p231 = por %p229, %p230
      %p232 = scmp.ne.s32.totalorder %s223, %s224
      %p233 = scmp.eq.s32.totalorder %s24, 0
      %p234 = por %p232, %p233
      %p235 = scmp.ne.s32.totalorder %s223, %s224
      %p236 = scmp.eq.s32.totalorder %s25, 1
      %p237 = por %p235, %p236
      %p239 = scmp.ne.s32.totalorder %s224, %s238
      %p240 = scmp.eq.s32.totalorder %s25, 0
      %p241 = por %p239, %p240
      %s242 = ssub.s32 %s19, %s26
      %p243 = scmp.eq.s32.totalorder %s242, 0
      %s245 = sadd.s32 %s244, 1
      %s246 = scalar_select %p243, %s244, %s245
      %p249 = pneg %p243
      %p250 = scmp.eq.s32.totalorder %s19, 1
      %p251 = por %p249, %p250
      %p252 = scmp.ne.s32.totalorder %s244, %s247
      %p253 = scmp.eq.s32.totalorder %s19, 0
      %p254 = por %p252, %p253
      %p255 = scmp.ne.s32.totalorder %s244, %s247
      %p256 = scmp.eq.s32.totalorder %s24, 1
      %p257 = por %p255, %p256
      %p258 = scmp.ne.s32.totalorder %s247, %s248
      %p259 = scmp.eq.s32.totalorder %s24, 0
      %p260 = por %p258, %p259
      %p261 = scmp.ne.s32.totalorder %s247, %s248
      %p262 = scmp.eq.s32.totalorder %s25, 1
      %p263 = por %p261, %p262
      %p265 = scmp.ne.s32.totalorder %s248, %s264
      %p266 = scmp.eq.s32.totalorder %s25, 0
      %p267 = por %p265, %p266
      %p268 = scmp.le.s32.totalorder 1, %s19
      %p269 = scmp.lt.s32.totalorder %s19, 3
      %p270 = pnand %p268, %p269
      %p271 = pneg %p270
      // Predicated region
      $region9: #{tpu_custom_call.1} parent=5 // pred_check
        _
      $region10: #{tpu_custom_call.1} parent=5 // pred_check_branch
        %273 = sbr.rel (%p270) target = $region12
      $region11: #{tpu_custom_call.1} parent=5 // pred_region
        %s274 = ssub.s32 %s19, 1
        // Predicated region
        $region13: #{tpu_custom_call.1} parent=11 // pred_check
          %p275 = pneg %p66
        $region14: #{tpu_custom_call.1} parent=11 // pred_check_branch
          %277 = sbr.rel (%p275) target = $region16
        $region15: #{tpu_custom_call.1} parent=11 // pred_region
          _
        $region16: #{tpu_custom_call.1} parent=11 // pred_fallthru
          _
        // Predicated region
        $region17: #{tpu_custom_call.1} parent=11 // pred_check
          %p278 = pneg %p87
        $region18: #{tpu_custom_call.1} parent=11 // pred_check_branch
          %280 = sbr.rel (%p278) target = $region20
        $region19: #{tpu_custom_call.1} parent=11 // pred_region
          _
        $region20: #{tpu_custom_call.1} parent=11 // pred_fallthru
          _
        // Predicated region
        $region21: #{tpu_custom_call.1} parent=11 // pred_check
          %p281 = pneg %p108
        $region22: #{tpu_custom_call.1} parent=11 // pred_check_branch
          %283 = sbr.rel (%p281) target = $region24
        $region23: #{tpu_custom_call.1} parent=11 // pred_region
          _
        $region24: #{tpu_custom_call.1} parent=11 // pred_fallthru
          _
        // Predicated region
        $region25: #{tpu_custom_call.1} parent=11 // pred_check
          %p284 = pneg %p129
        $region26: #{tpu_custom_call.1} parent=11 // pred_check_branch
          %286 = sbr.rel (%p284) target = $region28
        $region27: #{tpu_custom_call.1} parent=11 // pred_region
          _
        $region28: #{tpu_custom_call.1} parent=11 // pred_fallthru
          _
        // Predicated region
        $region29: #{tpu_custom_call.1} parent=11 // pred_check
          %p287 = pneg %p150
        $region30: #{tpu_custom_call.1} parent=11 // pred_check_branch
          %289 = sbr.rel (%p287) target = $region32
        $region31: #{tpu_custom_call.1} parent=11 // pred_region
          _
        $region32: #{tpu_custom_call.1} parent=11 // pred_fallthru
          _
        // Predicated region
        $region33: #{tpu_custom_call.1} parent=11 // pred_check
          %p290 = pneg %p171
        $region34: #{tpu_custom_call.1} parent=11 // pred_check_branch
          %292 = sbr.rel (%p290) target = $region36
        $region35: #{tpu_custom_call.1} parent=11 // pred_region
          _
        $region36: #{tpu_custom_call.1} parent=11 // pred_fallthru
          _
        // Predicated region
        $region37: #{tpu_custom_call.1} parent=11 // pred_check
          %p293 = pneg %p192
        $region38: #{tpu_custom_call.1} parent=11 // pred_check_branch
          %295 = sbr.rel (%p293) target = $region40
        $region39: #{tpu_custom_call.1} parent=11 // pred_region
          _
        $region40: #{tpu_custom_call.1} parent=11 // pred_fallthru
          _
        // Predicated region
        $region41: #{tpu_custom_call.1} parent=11 // pred_check
          %p296 = pneg %p213
        $region42: #{tpu_custom_call.1} parent=11 // pred_check_branch
          %298 = sbr.rel (%p296) target = $region44
        $region43: #{tpu_custom_call.1} parent=11 // pred_region
          _
        $region44: #{tpu_custom_call.1} parent=11 // pred_fallthru
          _
        // Predicated region
        $region45: #{tpu_custom_call.1} parent=11 // pred_check
          %p299 = pneg %p234
        $region46: #{tpu_custom_call.1} parent=11 // pred_check_branch
          %301 = sbr.rel (%p299) target = $region48
        $region47: #{tpu_custom_call.1} parent=11 // pred_region
          _
        $region48: #{tpu_custom_call.1} parent=11 // pred_fallthru
          _
      $region12: #{tpu_custom_call.1} parent=5 // pred_fallthru
        _
      %p302 = scmp.lt.s32.totalorder %s19, 2
      // Predicated region
      $region49: #{tpu_custom_call.1} parent=5 // pred_check
        %p303 = pneg %p302
      $region50: #{tpu_custom_call.1} parent=5 // pred_check_branch
        %305 = sbr.rel (%p303) target = $region52
      $region51: #{tpu_custom_call.1} parent=5 // pred_region
        // Predicated region
        $region53: #{tpu_custom_call.1} parent=51 // pred_check
          %p306 = pneg %p39
        $region54: #{tpu_custom_call.1} parent=51 // pred_check_branch
          %308 = sbr.rel (%p306) target = $region56
        $region55: #{tpu_custom_call.1} parent=51 // pred_region
          %s309 = smul.u32 2, %s19
          %p310 = scmp.lt.s32.totalorder %s309, 3
          %s311 = scalar_select %p310, %s309, 3
          %s312 = smul.addr %s311, 2
          %s313 = smul.addr %s312, 4
          %s314 = scalar_lea.vmem %s0, %s313
          %s315 = smul.u32 2, %s19
        $region56: #{tpu_custom_call.1} parent=51 // pred_fallthru
          _
      $region52: #{tpu_custom_call.1} parent=5 // pred_fallthru
        _
      %p316 = scmp.le.s32.totalorder 1, %s19
      %p317 = scmp.lt.s32.totalorder %s19, 3
      %p318 = pnand %p316, %p317
      %p319 = pneg %p318
      // Predicated region
      $region57: #{tpu_custom_call.1} parent=5 // pred_check
        _
      $region58: #{tpu_custom_call.1} parent=5 // pred_check_branch
        %321 = sbr.rel (%p318) target = $region60
      $region59: #{tpu_custom_call.1} parent=5 // pred_region
        %s322 = ssub.s32 %s19, 1
        %s323 = smul.u32 2, %s24
        %p324 = scmp.lt.s32.totalorder %s323, 3
        %s325 = scalar_select %p324, %s323, 3
        %s326 = smul.addr %s325, 2
        %s327 = smul.addr %s326, 4
        %s328 = scalar_lea.vmem %s0, %s327
        %p329 = pneg %p45
        %p330 = pneg %p42
        %p331 = pneg %p66
        %p332 = pneg %p63
        %p333 = pneg %p87
        %p334 = pneg %p84
        %p335 = pneg %p108
        %p336 = pneg %p105
        %p337 = pneg %p129
        %p338 = pneg %p126
        %p339 = pneg %p150
        %p340 = pneg %p147
        %p341 = pneg %p171
        %p342 = pneg %p168
        %p343 = pneg %p192
        %p344 = pneg %p189
        %p345 = pneg %p213
        %p346 = pneg %p210
        %p347 = pneg %p234
        %p348 = pneg %p231
        %p349 = pneg %p260
        %p350 = pneg %p257
        %s351 = sand.u32 %s247, 1
        %s352 = scalar_lea.sflag [#allocation3], %s351
        %s353 = sand.u32 %s247, 1
        %s354 = smul.addr %s353, 16
        %s355 = scalar_lea.vmem [#allocation2], %s354
        %s356 = smul.u32 2, %s24
        %p357 = scmp.lt.s32.totalorder %s356, 3
        %s358 = scalar_select %p357, %s356, 3
        %s359 = smul.addr %s358, 2
        %s360 = smul.addr %s359, 4
        %s361 = scalar_lea.vmem %s0, %s360
        %s362 = smul.u32 2, %s24
        %s363 = smul.u32 2, %s24
        %v364 = vld [vmem:[%s1] sm:$0xff]
        %v365 = vld [vmem:[%s1 + $0x8] sm:$0xff]
        %v366 = vld [vmem:[%s1 + $0x10] sm:$0xff]
        %v367 = vld [vmem:[%s2] sm:$0xff]
        %v368 = vld [vmem:[%s2 + $0x8] sm:$0xff]
        %v369 = vld [vmem:[%s2 + $0x10] sm:$0xff]
        %v370 = vld [vmem:[%s3] sm:$0xff]
        %v371 = vld [vmem:[%s3 + $0x8] sm:$0xff]
        %v372 = vld [vmem:[%s3 + $0x10] sm:$0xff]
        %v373 = vld [vmem:[%s4] sm:$0xff]
        %v374 = vld [vmem:[%s4 + $0x8] sm:$0xff]
        %v375 = vld [vmem:[%s4 + $0x10] sm:$0xff]
        %v376 = vld [vmem:[%s5] sm:$0xff]
        %v377 = vld [vmem:[%s5 + $0x8] sm:$0xff]
        %v378 = vld [vmem:[%s5 + $0x10] sm:$0xff]
        %v379 = vld [vmem:[%s6] sm:$0xff]
        %v380 = vld [vmem:[%s6 + $0x8] sm:$0xff]
        %v381 = vld [vmem:[%s6 + $0x10] sm:$0xff]
        %v382 = vld [vmem:[%s7] sm:$0xf]
        %v383 = vld [vmem:[%s8] sm:$0xf]
        %v384 = vld [vmem:[%s9] sm:$0xf]
        %v385 = vlaneseq
        %v386 = vand.u32 %v385, 127
        %v387 = vadd.s32 %v386, 128
        %vm388 = vcmp.lt.s32.totalorder %v386, 0
        %v389 = vsub.s32 0, %v386
        %v390 = vsel %vm388, %v389, %v386
        %v391 = vshrl.u32 %v390, 4
        %v392 = vand.u32 %v390, 15
        %v393 = vsub.s32 0, %v392
        %v394 = vsel %vm388, %v393, %v392
        %vm395 = vcmp.lt.s32.totalorder %v387, 0
        %v396 = vsub.s32 0, %v387
        %v397 = vsel %vm395, %v396, %v387
        %v398 = vshrl.u32 %v397, 4
        %v399 = vand.u32 %v397, 15
        %v400 = vsub.s32 0, %v399
        %v401 = vsel %vm395, %v400, %v399
        %vm402 = vcmp.ne.s32.totalorder %v394, 0
        %vm403 = vcmp.ne.s32.totalorder %v401, 0
        %vm404 = vcmp.lt.s32.totalorder %v394, 0
        %vm405 = vcmp.lt.s32.totalorder %v401, 0
        %vm406 = vmand %vm404, %vm402
        %vm407 = vmand %vm405, %vm403
        %v408 = vadd.s32 %v394, 16
        %v409 = vadd.s32 %v401, 16
        %v410 = vsel %vm406, %v408, %v394
        %v411 = vsel %vm407, %v409, %v401
        %vm412 = vcmp.ge.s32.totalorder %v386, 16
        %vm413 = vcmp.ge.s32.totalorder %v387, 16
        %v414 = vsel %vm412, 1, 0
        %v415 = vsel %vm413, 1, 0
        %v416 = vcvt.s32.f32 %v414
        %v417 = vcvt.s32.f32 %v415
        %vm418 = vcmp.lt.s32.totalorder %v386, 240
        %vm419 = vcmp.lt.s32.totalorder %v387, 240
        %v420 = vsel %vm418, 1, 0
        %v421 = vsel %vm419, 1, 0
        %v422 = vcvt.s32.f32 %v420
        %v423 = vcvt.s32.f32 %v421
        %vm424 = vcmp.ge.s32.totalorder %v410, 1
        %vm425 = vcmp.ge.s32.totalorder %v411, 1
        %v426 = vsel %vm424, 1, 0
        %v427 = vsel %vm425, 1, 0
        %v428 = vcvt.s32.f32 %v426
        %v429 = vcvt.s32.f32 %v427
        %vm430 = vcmp.lt.s32.totalorder %v410, 15
        %vm431 = vcmp.lt.s32.totalorder %v411, 15
        %v432 = vsel %vm430, 1, 0
        %v433 = vsel %vm431, 1, 0
        %v434 = vcvt.s32.f32 %v432
        %v435 = vcvt.s32.f32 %v433
        %v436 = vmul.f32 %v416, %v428
        %v437 = vmul.f32 %v417, %v429
        %v438 = vmul.f32 %v416, %v434
        %v439 = vmul.f32 %v417, %v435
        %v440 = vmul.f32 %v422, %v428
        %v441 = vmul.f32 %v423, %v429
        %v442 = vmul.f32 %v422, %v434
        %v443 = vmul.f32 %v423, %v435
        %v444 = vld [vmem:[%s361] sm:$0xff]
        %446 = vset.pattern.permute.xlu0 0
        %447 = vperm.xlu0 %446, %v364
        %v448 = vpop.permute.xlu0 %447
        %451 = vset.pattern.permute.xlu0 0
        %452 = vperm.xlu0 %451, %v365
        %v453 = vpop.permute.xlu0 %452
        %456 = vset.pattern.permute.xlu0 0
        %457 = vperm.xlu0 %456, %v366
        %v458 = vpop.permute.xlu0 %457
        %v461 = vperm.slane %v444, 0
        %v462 = vperm.slane %v444, 4
        %v465 = vperm.slane %v461, 0
        %v466 = vperm.slane %v462, 0
        %v467 = vmul.f32 %v448, %v465
        %v468 = vmul.f32 %v448, %v466
        %v469 = vmul.f32 %v453, %v465
        %v470 = vmul.f32 %v453, %v466
        %v471 = vmul.f32 %v458, %v465
        %v472 = vmul.f32 %v458, %v466
        %v473 = vadd.f32 %v467, 0.0
        %v474 = vadd.f32 %v468, 0.0
        %v475 = vadd.f32 %v469, 0.0
        %v476 = vadd.f32 %v470, 0.0
        %v477 = vadd.f32 %v471, 0.0
        %v478 = vadd.f32 %v472, 0.0
        %479 = vset.pattern.permute.xlu0 1
        %480 = vperm.xlu0 %479, %v364
        %v481 = vpop.permute.xlu0 %480
        %483 = vset.pattern.permute.xlu0 1
        %484 = vperm.xlu0 %483, %v365
        %v485 = vpop.permute.xlu0 %484
        %487 = vset.pattern.permute.xlu0 1
        %488 = vperm.xlu0 %487, %v366
        %v489 = vpop.permute.xlu0 %488
        %v491 = vperm.slane %v444, 1
        %v492 = vperm.slane %v444, 5
        %v495 = vperm.slane %v491, 1
        %v496 = vperm.slane %v492, 1
        %v497 = vmul.f32 %v481, %v495
        %v498 = vmul.f32 %v481, %v496
        %v499 = vmul.f32 %v485, %v495
        %v500 = vmul.f32 %v485, %v496
        %v501 = vmul.f32 %v489, %v495
        %v502 = vmul.f32 %v489, %v496
        %v503 = vadd.f32 %v473, %v497
        %v504 = vadd.f32 %v474, %v498
        %v505 = vadd.f32 %v475, %v499
        %v506 = vadd.f32 %v476, %v500
        %v507 = vadd.f32 %v477, %v501
        %v508 = vadd.f32 %v478, %v502
        %509 = vset.pattern.permute.xlu0 2
        %510 = vperm.xlu0 %509, %v364
        %v511 = vpop.permute.xlu0 %510
        %513 = vset.pattern.permute.xlu0 2
        %514 = vperm.xlu0 %513, %v365
        %v515 = vpop.permute.xlu0 %514
        %517 = vset.pattern.permute.xlu0 2
        %518 = vperm.xlu0 %517, %v366
        %v519 = vpop.permute.xlu0 %518
        %v521 = vperm.slane %v444, 2
        %v522 = vperm.slane %v444, 6
        %v525 = vperm.slane %v521, 2
        %v526 = vperm.slane %v522, 2
        %v527 = vmul.f32 %v511, %v525
        %v528 = vmul.f32 %v511, %v526
        %v529 = vmul.f32 %v515, %v525
        %v530 = vmul.f32 %v515, %v526
        %v531 = vmul.f32 %v519, %v525
        %v532 = vmul.f32 %v519, %v526
        %v533 = vadd.f32 %v503, %v527
        %v534 = vadd.f32 %v504, %v528
        %v535 = vadd.f32 %v505, %v529
        %v536 = vadd.f32 %v506, %v530
        %v537 = vadd.f32 %v507, %v531
        %v538 = vadd.f32 %v508, %v532
        %539 = vset.pattern.permute.xlu0 3
        %540 = vperm.xlu0 %539, %v364
        %v541 = vpop.permute.xlu0 %540
        %543 = vset.pattern.permute.xlu0 3
        %544 = vperm.xlu0 %543, %v365
        %v545 = vpop.permute.xlu0 %544
        %547 = vset.pattern.permute.xlu0 3
        %548 = vperm.xlu0 %547, %v366
        %v549 = vpop.permute.xlu0 %548
        %v551 = vperm.slane %v444, 3
        %v552 = vperm.slane %v444, 7
        %v555 = vperm.slane %v551, 3
        %v556 = vperm.slane %v552, 3
        %v557 = vmul.f32 %v541, %v555
        %v558 = vmul.f32 %v541, %v556
        %v559 = vmul.f32 %v545, %v555
        %v560 = vmul.f32 %v545, %v556
        %v561 = vmul.f32 %v549, %v555
        %v562 = vmul.f32 %v549, %v556
        %v563 = vadd.f32 %v533, %v557
        %v564 = vadd.f32 %v534, %v558
        %v565 = vadd.f32 %v535, %v559
        %v566 = vadd.f32 %v536, %v560
        %v567 = vadd.f32 %v537, %v561
        %v568 = vadd.f32 %v538, %v562
        %570 = vset.pattern.permute.xlu0 0
        %571 = vperm.xlu0 %570, %v367
        %v572 = vpop.permute.xlu0 %571
        %575 = vset.pattern.permute.xlu0 0
        %576 = vperm.xlu0 %575, %v368
        %v577 = vpop.permute.xlu0 %576
        %580 = vset.pattern.permute.xlu0 0
        %581 = vperm.xlu0 %580, %v369
        %v582 = vpop.permute.xlu0 %581
        %v584 = vmul.f32 %v563, %v572
        %v585 = vmul.f32 %v564, %v572
        %v586 = vmul.f32 %v565, %v577
        %v587 = vmul.f32 %v566, %v577
        %v588 = vmul.f32 %v567, %v582
        %v589 = vmul.f32 %v568, %v582
        %591 = vset.pattern.permute.xlu0 0
        %592 = vperm.xlu0 %591, %v370
        %v593 = vpop.permute.xlu0 %592
        %596 = vset.pattern.permute.xlu0 0
        %597 = vperm.xlu0 %596, %v371
        %v598 = vpop.permute.xlu0 %597
        %601 = vset.pattern.permute.xlu0 0
        %602 = vperm.xlu0 %601, %v372
        %v603 = vpop.permute.xlu0 %602
        %v605 = vadd.f32 %v584, %v593
        %v606 = vadd.f32 %v585, %v593
        %v607 = vadd.f32 %v586, %v598
        %v608 = vadd.f32 %v587, %v598
        %v609 = vadd.f32 %v588, %v603
        %v610 = vadd.f32 %v589, %v603
        %v611 = vmax.f32 %v605, 0.0
        %v612 = vmax.f32 %v606, 0.0
        %v613 = vmax.f32 %v607, 0.0
        %v614 = vmax.f32 %v608, 0.0
        %v615 = vmax.f32 %v609, 0.0
        %v616 = vmax.f32 %v610, 0.0
        %v617 = vmin.f32 %v611, 6.0
        %v618 = vmin.f32 %v612, 6.0
        %v619 = vmin.f32 %v613, 6.0
        %v620 = vmin.f32 %v614, 6.0
        %v621 = vmin.f32 %v615, 6.0
        %v622 = vmin.f32 %v616, 6.0
        %623 = vrot.lane.b32.xlu0 %v617, 17
        %v624 = vpop.permute.xlu0 %623
        %625 = vrot.lane.b32.xlu0 %v619, 17
        %v626 = vpop.permute.xlu0 %625
        %627 = vrot.lane.b32.xlu0 %v621, 17
        %v628 = vpop.permute.xlu0 %627
        %629 = vrot.lane.b32.xlu0 %v618, 17
        %v630 = vpop.permute.xlu0 %629
        %631 = vrot.lane.b32.xlu0 %v620, 17
        %v632 = vpop.permute.xlu0 %631
        %633 = vrot.lane.b32.xlu0 %v622, 17
        %v634 = vpop.permute.xlu0 %633
        %vm635 = vcmp.lt.s32.totalorder %v386, 17
        %v636 = vsel %vm635, %v624, %v630
        %v637 = vsel %vm635, %v626, %v632
        %v638 = vsel %vm635, %v628, %v634
        %v639 = vsel %vm635, %v630, %v624
        %v640 = vsel %vm635, %v632, %v626
        %v641 = vsel %vm635, %v634, %v628
        %v642 = vmul.f32 %v639, %v436
        %v643 = vmul.f32 %v636, %v437
        %v644 = vmul.f32 %v640, %v436
        %v645 = vmul.f32 %v637, %v437
        %v646 = vmul.f32 %v641, %v436
        %v647 = vmul.f32 %v638, %v437
        %649 = vset.pattern.permute.xlu0 0
        %650 = vperm.xlu0 %649, %v373
        %v651 = vpop.permute.xlu0 %650
        %654 = vset.pattern.permute.xlu0 0
        %655 = vperm.xlu0 %654, %v374
        %v656 = vpop.permute.xlu0 %655
        %659 = vset.pattern.permute.xlu0 0
        %660 = vperm.xlu0 %659, %v375
        %v661 = vpop.permute.xlu0 %660
        %v663 = vmul.f32 %v642, %v651
        %v664 = vmul.f32 %v643, %v651
        %v665 = vmul.f32 %v644, %v656
        %v666 = vmul.f32 %v645, %v656
        %v667 = vmul.f32 %v646, %v661
        %v668 = vmul.f32 %v647, %v661
        %v669 = vadd.f32 %v663, 0.0
        %v670 = vadd.f32 %v664, 0.0
        %v671 = vadd.f32 %v665, 0.0
        %v672 = vadd.f32 %v666, 0.0
        %v673 = vadd.f32 %v667, 0.0
        %v674 = vadd.f32 %v668, 0.0
        %675 = vrot.lane.b32.xlu0 %v617, 16
        %v676 = vpop.permute.xlu0 %675
        %677 = vrot.lane.b32.xlu0 %v619, 16
        %v678 = vpop.permute.xlu0 %677
        %679 = vrot.lane.b32.xlu0 %v621, 16
        %v680 = vpop.permute.xlu0 %679
        %681 = vrot.lane.b32.xlu0 %v618, 16
        %v682 = vpop.permute.xlu0 %681
        %683 = vrot.lane.b32.xlu0 %v620, 16
        %v684 = vpop.permute.xlu0 %683
        %685 = vrot.lane.b32.xlu0 %v622, 16
        %v686 = vpop.permute.xlu0 %685
        %vm687 = vcmp.lt.s32.totalorder %v386, 16
        %v688 = vsel %vm687, %v676, %v682
        %v689 = vsel %vm687, %v678, %v684
        %v690 = vsel %vm687, %v680, %v686
        %v691 = vsel %vm687, %v682, %v676
        %v692 = vsel %vm687, %v684, %v678
        %v693 = vsel %vm687, %v686, %v680
        %v694 = vmul.f32 %v691, %v416
        %v695 = vmul.f32 %v688, %v417
        %v696 = vmul.f32 %v692, %v416
        %v697 = vmul.f32 %v689, %v417
        %v698 = vmul.f32 %v693, %v416
        %v699 = vmul.f32 %v690, %v417
        %700 = vset.pattern.permute.xlu0 1
        %701 = vperm.xlu0 %700, %v373
        %v702 = vpop.permute.xlu0 %701
        %704 = vset.pattern.permute.xlu0 1
        %705 = vperm.xlu0 %704, %v374
        %v706 = vpop.permute.xlu0 %705
        %708 = vset.pattern.permute.xlu0 1
        %709 = vperm.xlu0 %708, %v375
        %v710 = vpop.permute.xlu0 %709
        %v712 = vmul.f32 %v694, %v702
        %v713 = vmul.f32 %v695, %v702
        %v714 = vmul.f32 %v696, %v706
        %v715 = vmul.f32 %v697, %v706
        %v716 = vmul.f32 %v698, %v710
        %v717 = vmul.f32 %v699, %v710
        %v718 = vadd.f32 %v669, %v712
        %v719 = vadd.f32 %v670, %v713
        %v720 = vadd.f32 %v671, %v714
        %v721 = vadd.f32 %v672, %v715
        %v722 = vadd.f32 %v673, %v716
        %v723 = vadd.f32 %v674, %v717
        %724 = vrot.lane.b32.xlu0 %v617, 15
        %v725 = vpop.permute.xlu0 %724
        %726 = vrot.lane.b32.xlu0 %v619, 15
        %v727 = vpop.permute.xlu0 %726
        %728 = vrot.lane.b32.xlu0 %v621, 15
        %v729 = vpop.permute.xlu0 %728
        %730 = vrot.lane.b32.xlu0 %v618, 15
        %v731 = vpop.permute.xlu0 %730
        %732 = vrot.lane.b32.xlu0 %v620, 15
        %v733 = vpop.permute.xlu0 %732
        %734 = vrot.lane.b32.xlu0 %v622, 15
        %v735 = vpop.permute.xlu0 %734
        %vm736 = vcmp.lt.s32.totalorder %v386, 15
        %v737 = vsel %vm736, %v725, %v731
        %v738 = vsel %vm736, %v727, %v733
        %v739 = vsel %vm736, %v729, %v735
        %v740 = vsel %vm736, %v731, %v725
        %v741 = vsel %vm736, %v733, %v727
        %v742 = vsel %vm736, %v735, %v729
        %v743 = vmul.f32 %v740, %v438
        %v744 = vmul.f32 %v737, %v439
        %v745 = vmul.f32 %v741, %v438
        %v746 = vmul.f32 %v738, %v439
        %v747 = vmul.f32 %v742, %v438
        %v748 = vmul.f32 %v739, %v439
        %749 = vset.pattern.permute.xlu0 2
        %750 = vperm.xlu0 %749, %v373
        %v751 = vpop.permute.xlu0 %750
        %753 = vset.pattern.permute.xlu0 2
        %754 = vperm.xlu0 %753, %v374
        %v755 = vpop.permute.xlu0 %754
        %757 = vset.pattern.permute.xlu0 2
        %758 = vperm.xlu0 %757, %v375
        %v759 = vpop.permute.xlu0 %758
        %v761 = vmul.f32 %v743, %v751
        %v762 = vmul.f32 %v744, %v751
        %v763 = vmul.f32 %v745, %v755
        %v764 = vmul.f32 %v746, %v755
        %v765 = vmul.f32 %v747, %v759
        %v766 = vmul.f32 %v748, %v759
        %v767 = vadd.f32 %v718, %v761
        %v768 = vadd.f32 %v719, %v762
        %v769 = vadd.f32 %v720, %v763
        %v770 = vadd.f32 %v721, %v764
        %v771 = vadd.f32 %v722, %v765
        %v772 = vadd.f32 %v723, %v766
        %773 = vrot.lane.b32.xlu0 %v617, 1
        %v774 = vpop.permute.xlu0 %773
        %775 = vrot.lane.b32.xlu0 %v619, 1
        %v776 = vpop.permute.xlu0 %775
        %777 = vrot.lane.b32.xlu0 %v621, 1
        %v778 = vpop.permute.xlu0 %777
        %779 = vrot.lane.b32.xlu0 %v618, 1
        %v780 = vpop.permute.xlu0 %779
        %781 = vrot.lane.b32.xlu0 %v620, 1
        %v782 = vpop.permute.xlu0 %781
        %783 = vrot.lane.b32.xlu0 %v622, 1
        %v784 = vpop.permute.xlu0 %783
        %vm785 = vcmp.lt.s32.totalorder %v386, 1
        %v786 = vsel %vm785, %v774, %v780
        %v787 = vsel %vm785, %v776, %v782
        %v788 = vsel %vm785, %v778, %v784
        %v789 = vsel %vm785, %v780, %v774
        %v790 = vsel %vm785, %v782, %v776
        %v791 = vsel %vm785, %v784, %v778
        %v792 = vmul.f32 %v789, %v428
        %v793 = vmul.f32 %v786, %v429
        %v794 = vmul.f32 %v790, %v428
        %v795 = vmul.f32 %v787, %v429
        %v796 = vmul.f32 %v791, %v428
        %v797 = vmul.f32 %v788, %v429
        %798 = vset.pattern.permute.xlu0 3
        %799 = vperm.xlu0 %798, %v373
        %v800 = vpop.permute.xlu0 %799
        %802 = vset.pattern.permute.xlu0 3
        %803 = vperm.xlu0 %802, %v374
        %v804 = vpop.permute.xlu0 %803
        %806 = vset.pattern.permute.xlu0 3
        %807 = vperm.xlu0 %806, %v375
        %v808 = vpop.permute.xlu0 %807
        %v810 = vmul.f32 %v792, %v800
        %v811 = vmul.f32 %v793, %v800
        %v812 = vmul.f32 %v794, %v804
        %v813 = vmul.f32 %v795, %v804
        %v814 = vmul.f32 %v796, %v808
        %v815 = vmul.f32 %v797, %v808
        %v816 = vadd.f32 %v767, %v810
        %v817 = vadd.f32 %v768, %v811
        %v818 = vadd.f32 %v769, %v812
        %v819 = vadd.f32 %v770, %v813
        %v820 = vadd.f32 %v771, %v814
        %v821 = vadd.f32 %v772, %v815
        %822 = vset.pattern.permute.xlu0 4
        %823 = vperm.xlu0 %822, %v373
        %v824 = vpop.permute.xlu0 %823
        %826 = vset.pattern.permute.xlu0 4
        %827 = vperm.xlu0 %826, %v374
        %v828 = vpop.permute.xlu0 %827
        %830 = vset.pattern.permute.xlu0 4
        %831 = vperm.xlu0 %830, %v375
        %v832 = vpop.permute.xlu0 %831
        %v834 = vmul.f32 %v617, %v824
        %v835 = vmul.f32 %v618, %v824
        %v836 = vmul.f32 %v619, %v828
        %v837 = vmul.f32 %v620, %v828
        %v838 = vmul.f32 %v621, %v832
        %v839 = vmul.f32 %v622, %v832
        %v840 = vadd.f32 %v816, %v834
        %v841 = vadd.f32 %v817, %v835
        %v842 = vadd.f32 %v818, %v836
        %v843 = vadd.f32 %v819, %v837
        %v844 = vadd.f32 %v820, %v838
        %v845 = vadd.f32 %v821, %v839
        %846 = vrot.lane.b32.xlu0 %v617, 127
        %v847 = vpop.permute.xlu0 %846
        %848 = vrot.lane.b32.xlu0 %v619, 127
        %v849 = vpop.permute.xlu0 %848
        %850 = vrot.lane.b32.xlu0 %v621, 127
        %v851 = vpop.permute.xlu0 %850
        %852 = vrot.lane.b32.xlu0 %v618, 127
        %v853 = vpop.permute.xlu0 %852
        %854 = vrot.lane.b32.xlu0 %v620, 127
        %v855 = vpop.permute.xlu0 %854
        %856 = vrot.lane.b32.xlu0 %v622, 127
        %v857 = vpop.permute.xlu0 %856
        %vm858 = vcmp.lt.s32.totalorder %v386, 127
        %v859 = vsel %vm858, %v847, %v853
        %v860 = vsel %vm858, %v849, %v855
        %v861 = vsel %vm858, %v851, %v857
        %v862 = vsel %vm858, %v853, %v847
        %v863 = vsel %vm858, %v855, %v849
        %v864 = vsel %vm858, %v857, %v851
        %v865 = vmul.f32 %v859, %v434
        %v866 = vmul.f32 %v862, %v435
        %v867 = vmul.f32 %v860, %v434
        %v868 = vmul.f32 %v863, %v435
        %v869 = vmul.f32 %v861, %v434
        %v870 = vmul.f32 %v864, %v435
        %871 = vset.pattern.permute.xlu0 5
        %872 = vperm.xlu0 %871, %v373
        %v873 = vpop.permute.xlu0 %872
        %875 = vset.pattern.permute.xlu0 5
        %876 = vperm.xlu0 %875, %v374
        %v877 = vpop.permute.xlu0 %876
        %879 = vset.pattern.permute.xlu0 5
        %880 = vperm.xlu0 %879, %v375
        %v881 = vpop.permute.xlu0 %880
        %v883 = vmul.f32 %v865, %v873
        %v884 = vmul.f32 %v866, %v873
        %v885 = vmul.f32 %v867, %v877
        %v886 = vmul.f32 %v868, %v877
        %v887 = vmul.f32 %v869, %v881
        %v888 = vmul.f32 %v870, %v881
        %v889 = vadd.f32 %v840, %v883
        %v890 = vadd.f32 %v841, %v884
        %v891 = vadd.f32 %v842, %v885
        %v892 = vadd.f32 %v843, %v886
        %v893 = vadd.f32 %v844, %v887
        %v894 = vadd.f32 %v845, %v888
        %895 = vrot.lane.b32.xlu0 %v617, 113
        %v896 = vpop.permute.xlu0 %895
        %897 = vrot.lane.b32.xlu0 %v619, 113
        %v898 = vpop.permute.xlu0 %897
        %899 = vrot.lane.b32.xlu0 %v621, 113
        %v900 = vpop.permute.xlu0 %899
        %901 = vrot.lane.b32.xlu0 %v618, 113
        %v902 = vpop.permute.xlu0 %901
        %903 = vrot.lane.b32.xlu0 %v620, 113
        %v904 = vpop.permute.xlu0 %903
        %905 = vrot.lane.b32.xlu0 %v622, 113
        %v906 = vpop.permute.xlu0 %905
        %vm907 = vcmp.lt.s32.totalorder %v386, 113
        %v908 = vsel %vm907, %v896, %v902
        %v909 = vsel %vm907, %v898, %v904
        %v910 = vsel %vm907, %v900, %v906
        %v911 = vsel %vm907, %v902, %v896
        %v912 = vsel %vm907, %v904, %v898
        %v913 = vsel %vm907, %v906, %v900
        %v914 = vmul.f32 %v908, %v440
        %v915 = vmul.f32 %v911, %v441
        %v916 = vmul.f32 %v909, %v440
        %v917 = vmul.f32 %v912, %v441
        %v918 = vmul.f32 %v910, %v440
        %v919 = vmul.f32 %v913, %v441
        %920 = vset.pattern.permute.xlu0 6
        %921 = vperm.xlu0 %920, %v373
        %v922 = vpop.permute.xlu0 %921
        %924 = vset.pattern.permute.xlu0 6
        %925 = vperm.xlu0 %924, %v374
        %v926 = vpop.permute.xlu0 %925
        %928 = vset.pattern.permute.xlu0 6
        %929 = vperm.xlu0 %928, %v375
        %v930 = vpop.permute.xlu0 %929
        %v932 = vmul.f32 %v914, %v922
        %v933 = vmul.f32 %v915, %v922
        %v934 = vmul.f32 %v916, %v926
        %v935 = vmul.f32 %v917, %v926
        %v936 = vmul.f32 %v918, %v930
        %v937 = vmul.f32 %v919, %v930
        %v938 = vadd.f32 %v889, %v932
        %v939 = vadd.f32 %v890, %v933
        %v940 = vadd.f32 %v891, %v934
        %v941 = vadd.f32 %v892, %v935
        %v942 = vadd.f32 %v893, %v936
        %v943 = vadd.f32 %v894, %v937
        %944 = vrot.lane.b32.xlu0 %v617, 112
        %v945 = vpop.permute.xlu0 %944
        %946 = vrot.lane.b32.xlu0 %v619, 112
        %v947 = vpop.permute.xlu0 %946
        %948 = vrot.lane.b32.xlu0 %v621, 112
        %v949 = vpop.permute.xlu0 %948
        %950 = vrot.lane.b32.xlu0 %v618, 112
        %v951 = vpop.permute.xlu0 %950
        %952 = vrot.lane.b32.xlu0 %v620, 112
        %v953 = vpop.permute.xlu0 %952
        %954 = vrot.lane.b32.xlu0 %v622, 112
        %v955 = vpop.permute.xlu0 %954
        %vm956 = vcmp.lt.s32.totalorder %v386, 112
        %v957 = vsel %vm956, %v945, %v951
        %v958 = vsel %vm956, %v947, %v953
        %v959 = vsel %vm956, %v949, %v955
        %v960 = vsel %vm956, %v951, %v945
        %v961 = vsel %vm956, %v953, %v947
        %v962 = vsel %vm956, %v955, %v949
        %v963 = vmul.f32 %v957, %v422
        %v964 = vmul.f32 %v960, %v423
        %v965 = vmul.f32 %v958, %v422
        %v966 = vmul.f32 %v961, %v423
        %v967 = vmul.f32 %v959, %v422
        %v968 = vmul.f32 %v962, %v423
        %969 = vset.pattern.permute.xlu0 7
        %970 = vperm.xlu0 %969, %v373
        %v971 = vpop.permute.xlu0 %970
        %973 = vset.pattern.permute.xlu0 7
        %974 = vperm.xlu0 %973, %v374
        %v975 = vpop.permute.xlu0 %974
        %977 = vset.pattern.permute.xlu0 7
        %978 = vperm.xlu0 %977, %v375
        %v979 = vpop.permute.xlu0 %978
        %v981 = vmul.f32 %v963, %v971
        %v982 = vmul.f32 %v964, %v971
        %v983 = vmul.f32 %v965, %v975
        %v984 = vmul.f32 %v966, %v975
        %v985 = vmul.f32 %v967, %v979
        %v986 = vmul.f32 %v968, %v979
        %v987 = vadd.f32 %v938, %v981
        %v988 = vadd.f32 %v939, %v982
        %v989 = vadd.f32 %v940, %v983
        %v990 = vadd.f32 %v941, %v984
        %v991 = vadd.f32 %v942, %v985
        %v992 = vadd.f32 %v943, %v986
        %993 = vrot.lane.b32.xlu0 %v617, 111
        %v994 = vpop.permute.xlu0 %993
        %995 = vrot.lane.b32.xlu0 %v619, 111
        %v996 = vpop.permute.xlu0 %995
        %997 = vrot.lane.b32.xlu0 %v621, 111
        %v998 = vpop.permute.xlu0 %997
        %999 = vrot.lane.b32.xlu0 %v618, 111
        %v1000 = vpop.permute.xlu0 %999
        %1001 = vrot.lane.b32.xlu0 %v620, 111
        %v1002 = vpop.permute.xlu0 %1001
        %1003 = vrot.lane.b32.xlu0 %v622, 111
        %v1004 = vpop.permute.xlu0 %1003
        %vm1005 = vcmp.lt.s32.totalorder %v386, 111
        %v1006 = vsel %vm1005, %v994, %v1000
        %v1007 = vsel %vm1005, %v996, %v1002
        %v1008 = vsel %vm1005, %v998, %v1004
        %v1009 = vsel %vm1005, %v1000, %v994
        %v1010 = vsel %vm1005, %v1002, %v996
        %v1011 = vsel %vm1005, %v1004, %v998
        %v1012 = vmul.f32 %v1006, %v442
        %v1013 = vmul.f32 %v1009, %v443
        %v1014 = vmul.f32 %v1007, %v442
        %v1015 = vmul.f32 %v1010, %v443
        %v1016 = vmul.f32 %v1008, %v442
        %v1017 = vmul.f32 %v1011, %v443
        %1018 = vset.pattern.permute.xlu0 8
        %1019 = vperm.xlu0 %1018, %v373
        %v1020 = vpop.permute.xlu0 %1019
        %1022 = vset.pattern.permute.xlu0 8
        %1023 = vperm.xlu0 %1022, %v374
        %v1024 = vpop.permute.xlu0 %1023
        %1026 = vset.pattern.permute.xlu0 8
        %1027 = vperm.xlu0 %1026, %v375
        %v1028 = vpop.permute.xlu0 %1027
        %v1030 = vmul.f32 %v1012, %v1020
        %v1031 = vmul.f32 %v1013, %v1020
        %v1032 = vmul.f32 %v1014, %v1024
        %v1033 = vmul.f32 %v1015, %v1024
        %v1034 = vmul.f32 %v1016, %v1028
        %v1035 = vmul.f32 %v1017, %v1028
        %v1036 = vadd.f32 %v987, %v1030
        %v1037 = vadd.f32 %v988, %v1031
        %v1038 = vadd.f32 %v989, %v1032
        %v1039 = vadd.f32 %v990, %v1033
        %v1040 = vadd.f32 %v991, %v1034
        %v1041 = vadd.f32 %v992, %v1035
        %1043 = vset.pattern.permute.xlu0 0
        %1044 = vperm.xlu0 %1043, %v376
        %v1045 = vpop.permute.xlu0 %1044
        %1048 = vset.pattern.permute.xlu0 0
        %1049 = vperm.xlu0 %1048, %v377
        %v1050 = vpop.permute.xlu0 %1049
        %1053 = vset.pattern.permute.xlu0 0
        %1054 = vperm.xlu0 %1053, %v378
        %v1055 = vpop.permute.xlu0 %1054
        %v1057 = vmul.f32 %v1036, %v1045
        %v1058 = vmul.f32 %v1037, %v1045
        %v1059 = vmul.f32 %v1038, %v1050
        %v1060 = vmul.f32 %v1039, %v1050
        %v1061 = vmul.f32 %v1040, %v1055
        %v1062 = vmul.f32 %v1041, %v1055
        %1064 = vset.pattern.permute.xlu0 0
        %1065 = vperm.xlu0 %1064, %v379
        %v1066 = vpop.permute.xlu0 %1065
        %1069 = vset.pattern.permute.xlu0 0
        %1070 = vperm.xlu0 %1069, %v380
        %v1071 = vpop.permute.xlu0 %1070
        %1074 = vset.pattern.permute.xlu0 0
        %1075 = vperm.xlu0 %1074, %v381
        %v1076 = vpop.permute.xlu0 %1075
        %v1078 = vadd.f32 %v1057, %v1066
        %v1079 = vadd.f32 %v1058, %v1066
        %v1080 = vadd.f32 %v1059, %v1071
        %v1081 = vadd.f32 %v1060, %v1071
        %v1082 = vadd.f32 %v1061, %v1076
        %v1083 = vadd.f32 %v1062, %v1076
        %v1084 = vmax.f32 %v1078, 0.0
        %v1085 = vmax.f32 %v1079, 0.0
        %v1086 = vmax.f32 %v1080, 0.0
        %v1087 = vmax.f32 %v1081, 0.0
        %v1088 = vmax.f32 %v1082, 0.0
        %v1089 = vmax.f32 %v1083, 0.0
        %v1090 = vmin.f32 %v1084, 6.0
        %v1091 = vmin.f32 %v1085, 6.0
        %v1092 = vmin.f32 %v1086, 6.0
        %v1093 = vmin.f32 %v1087, 6.0
        %v1094 = vmin.f32 %v1088, 6.0
        %v1095 = vmin.f32 %v1089, 6.0
        %vm1096 = vcmask 195584
        %v1098 = vsel %vm1096, %v382, 0
        %1100 = vmatpush.msra.mxu0 0.0
        %1101 = vmatpush.msra.mxu0 0.0
        %1102 = vmatpush.msra.mxu0 0.0
        %1103 = vmatpush.msra.mxu0 0.0
        %1104 = vmatpush.msra.mxu0 0.0
        %1105 = vmatpush.msra.mxu0 0.0
        %1106 = vmatpush.msra.mxu0 0.0
        %1107 = vmatpush.msra.mxu0 0.0
        %1108 = vmatpush.msra.mxu0 0.0
        %1109 = vmatpush.msra.mxu0 0.0
        %1110 = vmatpush.msra.mxu0 0.0
        %1111 = vmatpush.msra.mxu0 0.0
        %1112 = vmatpush.msra.mxu0 0.0
        %1113 = vmatpush.msra.mxu0 %v1094
        %1114 = vmatpush.msra.mxu0 %v1092
        %1115 = vmatpush.msra.mxu0 %v1090
        %1116 = vmatmul.f32.gmra.mxu0 %v1098
        %v1117 = vpop.f32.mrf.mxu0
        %v1118 = vadd.f32 0.0, %v1117
        %1119 = vdwg.mxu0
        %1120 = vmatpush.msra.mxu0 0.0
        %1121 = vmatpush.msra.mxu0 0.0
        %1122 = vmatpush.msra.mxu0 0.0
        %1123 = vmatpush.msra.mxu0 0.0
        %1124 = vmatpush.msra.mxu0 0.0
        %1125 = vmatpush.msra.mxu0 0.0
        %1126 = vmatpush.msra.mxu0 0.0
        %1127 = vmatpush.msra.mxu0 0.0
        %1128 = vmatpush.msra.mxu0 0.0
        %1129 = vmatpush.msra.mxu0 0.0
        %1130 = vmatpush.msra.mxu0 0.0
        %1131 = vmatpush.msra.mxu0 0.0
        %1132 = vmatpush.msra.mxu0 0.0
        %1133 = vmatpush.msra.mxu0 %v1095
        %1134 = vmatpush.msra.mxu0 %v1093
        %1135 = vmatpush.msra.mxu0 %v1091
        %1136 = vmatmul.f32.gmra.mxu0 %v1098
        %v1137 = vpop.f32.mrf.mxu0
        %v1138 = vadd.f32 0.0, %v1137
        %1139 = vdwg.mxu0
        %1141 = vset.pattern.permute.xlu0 0
        %1142 = vperm.xlu0 %1141, %v383
        %v1143 = vpop.permute.xlu0 %1142
        %v1145 = vmul.f32 %v1118, %v1143
        %v1146 = vmul.f32 %v1138, %v1143
        %1148 = vset.pattern.permute.xlu0 0
        %1149 = vperm.xlu0 %1148, %v384
        %v1150 = vpop.permute.xlu0 %1149
        %v1152 = vadd.f32 %v1145, %v1150
        %v1153 = vadd.f32 %v1146, %v1150
        %1154 = vst [vmem:[#allocation1] ss:$2 sm:$0xff] %v444
        %v1155 = vld.sshfl [vmem:[#allocation1] sm:$0xff pattern:$0x75316420]
        %v1156 = vld.sshfl [vmem:[#allocation1 + $0x8] sm:$0xff pattern:$0x75316420]
        %v1159 = vadd.f32 %v1152, %v1155
        %v1160 = vadd.f32 %v1153, %v1156
        %v1163 = vrot.slane %v1160, 4
        %vm1164 = vcmask 1043456
        %v1165 = vsel %vm1164, %v1159, %v1163
        %1167 = vst [vmem:[%s355] sm:$0xff] %v1165
        %s1168 = scalar_lea.vmem %s361, 8
        %v1169 = vld [vmem:[%s1168] sm:$0xff]
        %v1171 = vperm.slane %v1169, 0
        %v1172 = vperm.slane %v1169, 4
        %v1175 = vperm.slane %v1171, 0
        %v1176 = vperm.slane %v1172, 0
        %v1177 = vmul.f32 %v448, %v1175
        %v1178 = vmul.f32 %v448, %v1176
        %v1179 = vmul.f32 %v453, %v1175
        %v1180 = vmul.f32 %v453, %v1176
        %v1181 = vmul.f32 %v458, %v1175
        %v1182 = vmul.f32 %v458, %v1176
        %v1183 = vadd.f32 %v1177, 0.0
        %v1184 = vadd.f32 %v1178, 0.0
        %v1185 = vadd.f32 %v1179, 0.0
        %v1186 = vadd.f32 %v1180, 0.0
        %v1187 = vadd.f32 %v1181, 0.0
        %v1188 = vadd.f32 %v1182, 0.0
        %v1189 = vperm.slane %v1169, 1
        %v1190 = vperm.slane %v1169, 5
        %v1193 = vperm.slane %v1189, 1
        %v1194 = vperm.slane %v1190, 1
        %v1195 = vmul.f32 %v481, %v1193
        %v1196 = vmul.f32 %v481, %v1194
        %v1197 = vmul.f32 %v485, %v1193
        %v1198 = vmul.f32 %v485, %v1194
        %v1199 = vmul.f32 %v489, %v1193
        %v1200 = vmul.f32 %v489, %v1194
        %v1201 = vadd.f32 %v1183, %v1195
        %v1202 = vadd.f32 %v1184, %v1196
        %v1203 = vadd.f32 %v1185, %v1197
        %v1204 = vadd.f32 %v1186, %v1198
        %v1205 = vadd.f32 %v1187, %v1199
        %v1206 = vadd.f32 %v1188, %v1200
        %v1207 = vperm.slane %v1169, 2
        %v1208 = vperm.slane %v1169, 6
        %v1211 = vperm.slane %v1207, 2
        %v1212 = vperm.slane %v1208, 2
        %v1213 = vmul.f32 %v511, %v1211
        %v1214 = vmul.f32 %v511, %v1212
        %v1215 = vmul.f32 %v515, %v1211
        %v1216 = vmul.f32 %v515, %v1212
        %v1217 = vmul.f32 %v519, %v1211
        %v1218 = vmul.f32 %v519, %v1212
        %v1219 = vadd.f32 %v1201, %v1213
        %v1220 = vadd.f32 %v1202, %v1214
        %v1221 = vadd.f32 %v1203, %v1215
        %v1222 = vadd.f32 %v1204, %v1216
        %v1223 = vadd.f32 %v1205, %v1217
        %v1224 = vadd.f32 %v1206, %v1218
        %v1225 = vperm.slane %v1169, 3
        %v1226 = vperm.slane %v1169, 7
        %v1229 = vperm.slane %v1225, 3
        %v1230 = vperm.slane %v1226, 3
        %v1231 = vmul.f32 %v541, %v1229
        %v1232 = vmul.f32 %v541, %v1230
        %v1233 = vmul.f32 %v545, %v1229
        %v1234 = vmul.f32 %v545, %v1230
        %v1235 = vmul.f32 %v549, %v1229
        %v1236 = vmul.f32 %v549, %v1230
        %v1237 = vadd.f32 %v1219, %v1231
        %v1238 = vadd.f32 %v1220, %v1232
        %v1239 = vadd.f32 %v1221, %v1233
        %v1240 = vadd.f32 %v1222, %v1234
        %v1241 = vadd.f32 %v1223, %v1235
        %v1242 = vadd.f32 %v1224, %v1236
        %v1243 = vmul.f32 %v1237, %v572
        %v1244 = vmul.f32 %v1238, %v572
        %v1245 = vmul.f32 %v1239, %v577
        %v1246 = vmul.f32 %v1240, %v577
        %v1247 = vmul.f32 %v1241, %v582
        %v1248 = vmul.f32 %v1242, %v582
        %v1249 = vadd.f32 %v1243, %v593
        %v1250 = vadd.f32 %v1244, %v593
        %v1251 = vadd.f32 %v1245, %v598
        %v1252 = vadd.f32 %v1246, %v598
        %v1253 = vadd.f32 %v1247, %v603
        %v1254 = vadd.f32 %v1248, %v603
        %v1255 = vmax.f32 %v1249, 0.0
        %v1256 = vmax.f32 %v1250, 0.0
        %v1257 = vmax.f32 %v1251, 0.0
        %v1258 = vmax.f32 %v1252, 0.0
        %v1259 = vmax.f32 %v1253, 0.0
        %v1260 = vmax.f32 %v1254, 0.0
        %v1261 = vmin.f32 %v1255, 6.0
        %v1262 = vmin.f32 %v1256, 6.0
        %v1263 = vmin.f32 %v1257, 6.0
        %v1264 = vmin.f32 %v1258, 6.0
        %v1265 = vmin.f32 %v1259, 6.0
        %v1266 = vmin.f32 %v1260, 6.0
        %1267 = vrot.lane.b32.xlu0 %v1261, 17
        %v1268 = vpop.permute.xlu0 %1267
        %1269 = vrot.lane.b32.xlu0 %v1263, 17
        %v1270 = vpop.permute.xlu0 %1269
        %1271 = vrot.lane.b32.xlu0 %v1265, 17
        %v1272 = vpop.permute.xlu0 %1271
        %1273 = vrot.lane.b32.xlu0 %v1262, 17
        %v1274 = vpop.permute.xlu0 %1273
        %1275 = vrot.lane.b32.xlu0 %v1264, 17
        %v1276 = vpop.permute.xlu0 %1275
        %1277 = vrot.lane.b32.xlu0 %v1266, 17
        %v1278 = vpop.permute.xlu0 %1277
        %v1279 = vsel %vm635, %v1268, %v1274
        %v1280 = vsel %vm635, %v1270, %v1276
        %v1281 = vsel %vm635, %v1272, %v1278
        %v1282 = vsel %vm635, %v1274, %v1268
        %v1283 = vsel %vm635, %v1276, %v1270
        %v1284 = vsel %vm635, %v1278, %v1272
        %v1285 = vmul.f32 %v1282, %v436
        %v1286 = vmul.f32 %v1279, %v437
        %v1287 = vmul.f32 %v1283, %v436
        %v1288 = vmul.f32 %v1280, %v437
        %v1289 = vmul.f32 %v1284, %v436
        %v1290 = vmul.f32 %v1281, %v437
        %v1291 = vmul.f32 %v1285, %v651
        %v1292 = vmul.f32 %v1286, %v651
        %v1293 = vmul.f32 %v1287, %v656
        %v1294 = vmul.f32 %v1288, %v656
        %v1295 = vmul.f32 %v1289, %v661
        %v1296 = vmul.f32 %v1290, %v661
        %v1297 = vadd.f32 %v1291, 0.0
        %v1298 = vadd.f32 %v1292, 0.0
        %v1299 = vadd.f32 %v1293, 0.0
        %v1300 = vadd.f32 %v1294, 0.0
        %v1301 = vadd.f32 %v1295, 0.0
        %v1302 = vadd.f32 %v1296, 0.0
        %1303 = vrot.lane.b32.xlu0 %v1261, 16
        %v1304 = vpop.permute.xlu0 %1303
        %1305 = vrot.lane.b32.xlu0 %v1263, 16
        %v1306 = vpop.permute.xlu0 %1305
        %1307 = vrot.lane.b32.xlu0 %v1265, 16
        %v1308 = vpop.permute.xlu0 %1307
        %1309 = vrot.lane.b32.xlu0 %v1262, 16
        %v1310 = vpop.permute.xlu0 %1309
        %1311 = vrot.lane.b32.xlu0 %v1264, 16
        %v1312 = vpop.permute.xlu0 %1311
        %1313 = vrot.lane.b32.xlu0 %v1266, 16
        %v1314 = vpop.permute.xlu0 %1313
        %v1315 = vsel %vm687, %v1304, %v1310
        %v1316 = vsel %vm687, %v1306, %v1312
        %v1317 = vsel %vm687, %v1308, %v1314
        %v1318 = vsel %vm687, %v1310, %v1304
        %v1319 = vsel %vm687, %v1312, %v1306
        %v1320 = vsel %vm687, %v1314, %v1308
        %v1321 = vmul.f32 %v1318, %v416
        %v1322 = vmul.f32 %v1315, %v417
        %v1323 = vmul.f32 %v1319, %v416
        %v1324 = vmul.f32 %v1316, %v417
        %v1325 = vmul.f32 %v1320, %v416
        %v1326 = vmul.f32 %v1317, %v417
        %v1327 = vmul.f32 %v1321, %v702
        %v1328 = vmul.f32 %v1322, %v702
        %v1329 = vmul.f32 %v1323, %v706
        %v1330 = vmul.f32 %v1324, %v706
        %v1331 = vmul.f32 %v1325, %v710
        %v1332 = vmul.f32 %v1326, %v710
        %v1333 = vadd.f32 %v1297, %v1327
        %v1334 = vadd.f32 %v1298, %v1328
        %v1335 = vadd.f32 %v1299, %v1329
        %v1336 = vadd.f32 %v1300, %v1330
        %v1337 = vadd.f32 %v1301, %v1331
        %v1338 = vadd.f32 %v1302, %v1332
        %1339 = vrot.lane.b32.xlu0 %v1261, 15
        %v1340 = vpop.permute.xlu0 %1339
        %1341 = vrot.lane.b32.xlu0 %v1263, 15
        %v1342 = vpop.permute.xlu0 %1341
        %1343 = vrot.lane.b32.xlu0 %v1265, 15
        %v1344 = vpop.permute.xlu0 %1343
        %1345 = vrot.lane.b32.xlu0 %v1262, 15
        %v1346 = vpop.permute.xlu0 %1345
        %1347 = vrot.lane.b32.xlu0 %v1264, 15
        %v1348 = vpop.permute.xlu0 %1347
        %1349 = vrot.lane.b32.xlu0 %v1266, 15
        %v1350 = vpop.permute.xlu0 %1349
        %v1351 = vsel %vm736, %v1340, %v1346
        %v1352 = vsel %vm736, %v1342, %v1348
        %v1353 = vsel %vm736, %v1344, %v1350
        %v1354 = vsel %vm736, %v1346, %v1340
        %v1355 = vsel %vm736, %v1348, %v1342
        %v1356 = vsel %vm736, %v1350, %v1344
        %v1357 = vmul.f32 %v1354, %v438
        %v1358 = vmul.f32 %v1351, %v439
        %v1359 = vmul.f32 %v1355, %v438
        %v1360 = vmul.f32 %v1352, %v439
        %v1361 = vmul.f32 %v1356, %v438
        %v1362 = vmul.f32 %v1353, %v439
        %v1363 = vmul.f32 %v1357, %v751
        %v1364 = vmul.f32 %v1358, %v751
        %v1365 = vmul.f32 %v1359, %v755
        %v1366 = vmul.f32 %v1360, %v755
        %v1367 = vmul.f32 %v1361, %v759
        %v1368 = vmul.f32 %v1362, %v759
        %v1369 = vadd.f32 %v1333, %v1363
        %v1370 = vadd.f32 %v1334, %v1364
        %v1371 = vadd.f32 %v1335, %v1365
        %v1372 = vadd.f32 %v1336, %v1366
        %v1373 = vadd.f32 %v1337, %v1367
        %v1374 = vadd.f32 %v1338, %v1368
        %1375 = vrot.lane.b32.xlu0 %v1261, 1
        %v1376 = vpop.permute.xlu0 %1375
        %1377 = vrot.lane.b32.xlu0 %v1263, 1
        %v1378 = vpop.permute.xlu0 %1377
        %1379 = vrot.lane.b32.xlu0 %v1265, 1
        %v1380 = vpop.permute.xlu0 %1379
        %1381 = vrot.lane.b32.xlu0 %v1262, 1
        %v1382 = vpop.permute.xlu0 %1381
        %1383 = vrot.lane.b32.xlu0 %v1264, 1
        %v1384 = vpop.permute.xlu0 %1383
        %1385 = vrot.lane.b32.xlu0 %v1266, 1
        %v1386 = vpop.permute.xlu0 %1385
        %v1387 = vsel %vm785, %v1376, %v1382
        %v1388 = vsel %vm785, %v1378, %v1384
        %v1389 = vsel %vm785, %v1380, %v1386
        %v1390 = vsel %vm785, %v1382, %v1376
        %v1391 = vsel %vm785, %v1384, %v1378
        %v1392 = vsel %vm785, %v1386, %v1380
        %v1393 = vmul.f32 %v1390, %v428
        %v1394 = vmul.f32 %v1387, %v429
        %v1395 = vmul.f32 %v1391, %v428
        %v1396 = vmul.f32 %v1388, %v429
        %v1397 = vmul.f32 %v1392, %v428
        %v1398 = vmul.f32 %v1389, %v429
        %v1399 = vmul.f32 %v1393, %v800
        %v1400 = vmul.f32 %v1394, %v800
        %v1401 = vmul.f32 %v1395, %v804
        %v1402 = vmul.f32 %v1396, %v804
        %v1403 = vmul.f32 %v1397, %v808
        %v1404 = vmul.f32 %v1398, %v808
        %v1405 = vadd.f32 %v1369, %v1399
        %v1406 = vadd.f32 %v1370, %v1400
        %v1407 = vadd.f32 %v1371, %v1401
        %v1408 = vadd.f32 %v1372, %v1402
        %v1409 = vadd.f32 %v1373, %v1403
        %v1410 = vadd.f32 %v1374, %v1404
        %v1411 = vmul.f32 %v1261, %v824
        %v1412 = vmul.f32 %v1262, %v824
        %v1413 = vmul.f32 %v1263, %v828
        %v1414 = vmul.f32 %v1264, %v828
        %v1415 = vmul.f32 %v1265, %v832
        %v1416 = vmul.f32 %v1266, %v832
        %v1417 = vadd.f32 %v1405, %v1411
        %v1418 = vadd.f32 %v1406, %v1412
        %v1419 = vadd.f32 %v1407, %v1413
        %v1420 = vadd.f32 %v1408, %v1414
        %v1421 = vadd.f32 %v1409, %v1415
        %v1422 = vadd.f32 %v1410, %v1416
        %1423 = vrot.lane.b32.xlu0 %v1261, 127
        %v1424 = vpop.permute.xlu0 %1423
        %1425 = vrot.lane.b32.xlu0 %v1263, 127
        %v1426 = vpop.permute.xlu0 %1425
        %1427 = vrot.lane.b32.xlu0 %v1265, 127
        %v1428 = vpop.permute.xlu0 %1427
        %1429 = vrot.lane.b32.xlu0 %v1262, 127
        %v1430 = vpop.permute.xlu0 %1429
        %1431 = vrot.lane.b32.xlu0 %v1264, 127
        %v1432 = vpop.permute.xlu0 %1431
        %1433 = vrot.lane.b32.xlu0 %v1266, 127
        %v1434 = vpop.permute.xlu0 %1433
        %v1435 = vsel %vm858, %v1424, %v1430
        %v1436 = vsel %vm858, %v1426, %v1432
        %v1437 = vsel %vm858, %v1428, %v1434
        %v1438 = vsel %vm858, %v1430, %v1424
        %v1439 = vsel %vm858, %v1432, %v1426
        %v1440 = vsel %vm858, %v1434, %v1428
        %v1441 = vmul.f32 %v1435, %v434
        %v1442 = vmul.f32 %v1438, %v435
        %v1443 = vmul.f32 %v1436, %v434
        %v1444 = vmul.f32 %v1439, %v435
        %v1445 = vmul.f32 %v1437, %v434
        %v1446 = vmul.f32 %v1440, %v435
        %v1447 = vmul.f32 %v1441, %v873
        %v1448 = vmul.f32 %v1442, %v873
        %v1449 = vmul.f32 %v1443, %v877
        %v1450 = vmul.f32 %v1444, %v877
        %v1451 = vmul.f32 %v1445, %v881
        %v1452 = vmul.f32 %v1446, %v881
        %v1453 = vadd.f32 %v1417, %v1447
        %v1454 = vadd.f32 %v1418, %v1448
        %v1455 = vadd.f32 %v1419, %v1449
        %v1456 = vadd.f32 %v1420, %v1450
        %v1457 = vadd.f32 %v1421, %v1451
        %v1458 = vadd.f32 %v1422, %v1452
        %1459 = vrot.lane.b32.xlu0 %v1261, 113
        %v1460 = vpop.permute.xlu0 %1459
        %1461 = vrot.lane.b32.xlu0 %v1263, 113
        %v1462 = vpop.permute.xlu0 %1461
        %1463 = vrot.lane.b32.xlu0 %v1265, 113
        %v1464 = vpop.permute.xlu0 %1463
        %1465 = vrot.lane.b32.xlu0 %v1262, 113
        %v1466 = vpop.permute.xlu0 %1465
        %1467 = vrot.lane.b32.xlu0 %v1264, 113
        %v1468 = vpop.permute.xlu0 %1467
        %1469 = vrot.lane.b32.xlu0 %v1266, 113
        %v1470 = vpop.permute.xlu0 %1469
        %v1471 = vsel %vm907, %v1460, %v1466
        %v1472 = vsel %vm907, %v1462, %v1468
        %v1473 = vsel %vm907, %v1464, %v1470
        %v1474 = vsel %vm907, %v1466, %v1460
        %v1475 = vsel %vm907, %v1468, %v1462
        %v1476 = vsel %vm907, %v1470, %v1464
        %v1477 = vmul.f32 %v1471, %v440
        %v1478 = vmul.f32 %v1474, %v441
        %v1479 = vmul.f32 %v1472, %v440
        %v1480 = vmul.f32 %v1475, %v441
        %v1481 = vmul.f32 %v1473, %v440
        %v1482 = vmul.f32 %v1476, %v441
        %v1483 = vmul.f32 %v1477, %v922
        %v1484 = vmul.f32 %v1478, %v922
        %v1485 = vmul.f32 %v1479, %v926
        %v1486 = vmul.f32 %v1480, %v926
        %v1487 = vmul.f32 %v1481, %v930
        %v1488 = vmul.f32 %v1482, %v930
        %v1489 = vadd.f32 %v1453, %v1483
        %v1490 = vadd.f32 %v1454, %v1484
        %v1491 = vadd.f32 %v1455, %v1485
        %v1492 = vadd.f32 %v1456, %v1486
        %v1493 = vadd.f32 %v1457, %v1487
        %v1494 = vadd.f32 %v1458, %v1488
        %1495 = vrot.lane.b32.xlu0 %v1261, 112
        %v1496 = vpop.permute.xlu0 %1495
        %1497 = vrot.lane.b32.xlu0 %v1263, 112
        %v1498 = vpop.permute.xlu0 %1497
        %1499 = vrot.lane.b32.xlu0 %v1265, 112
        %v1500 = vpop.permute.xlu0 %1499
        %1501 = vrot.lane.b32.xlu0 %v1262, 112
        %v1502 = vpop.permute.xlu0 %1501
        %1503 = vrot.lane.b32.xlu0 %v1264, 112
        %v1504 = vpop.permute.xlu0 %1503
        %1505 = vrot.lane.b32.xlu0 %v1266, 112
        %v1506 = vpop.permute.xlu0 %1505
        %v1507 = vsel %vm956, %v1496, %v1502
        %v1508 = vsel %vm956, %v1498, %v1504
        %v1509 = vsel %vm956, %v1500, %v1506
        %v1510 = vsel %vm956, %v1502, %v1496
        %v1511 = vsel %vm956, %v1504, %v1498
        %v1512 = vsel %vm956, %v1506, %v1500
        %v1513 = vmul.f32 %v1507, %v422
        %v1514 = vmul.f32 %v1510, %v423
        %v1515 = vmul.f32 %v1508, %v422
        %v1516 = vmul.f32 %v1511, %v423
        %v1517 = vmul.f32 %v1509, %v422
        %v1518 = vmul.f32 %v1512, %v423
        %v1519 = vmul.f32 %v1513, %v971
        %v1520 = vmul.f32 %v1514, %v971
        %v1521 = vmul.f32 %v1515, %v975
        %v1522 = vmul.f32 %v1516, %v975
        %v1523 = vmul.f32 %v1517, %v979
        %v1524 = vmul.f32 %v1518, %v979
        %v1525 = vadd.f32 %v1489, %v1519
        %v1526 = vadd.f32 %v1490, %v1520
        %v1527 = vadd.f32 %v1491, %v1521
        %v1528 = vadd.f32 %v1492, %v1522
        %v1529 = vadd.f32 %v1493, %v1523
        %v1530 = vadd.f32 %v1494, %v1524
        %1531 = vrot.lane.b32.xlu0 %v1261, 111
        %v1532 = vpop.permute.xlu0 %1531
        %1533 = vrot.lane.b32.xlu0 %v1263, 111
        %v1534 = vpop.permute.xlu0 %1533
        %1535 = vrot.lane.b32.xlu0 %v1265, 111
        %v1536 = vpop.permute.xlu0 %1535
        %1537 = vrot.lane.b32.xlu0 %v1262, 111
        %v1538 = vpop.permute.xlu0 %1537
        %1539 = vrot.lane.b32.xlu0 %v1264, 111
        %v1540 = vpop.permute.xlu0 %1539
        %1541 = vrot.lane.b32.xlu0 %v1266, 111
        %v1542 = vpop.permute.xlu0 %1541
        %v1543 = vsel %vm1005, %v1532, %v1538
        %v1544 = vsel %vm1005, %v1534, %v1540
        %v1545 = vsel %vm1005, %v1536, %v1542
        %v1546 = vsel %vm1005, %v1538, %v1532
        %v1547 = vsel %vm1005, %v1540, %v1534
        %v1548 = vsel %vm1005, %v1542, %v1536
        %v1549 = vmul.f32 %v1543, %v442
        %v1550 = vmul.f32 %v1546, %v443
        %v1551 = vmul.f32 %v1544, %v442
        %v1552 = vmul.f32 %v1547, %v443
        %v1553 = vmul.f32 %v1545, %v442
        %v1554 = vmul.f32 %v1548, %v443
        %v1555 = vmul.f32 %v1549, %v1020
        %v1556 = vmul.f32 %v1550, %v1020
        %v1557 = vmul.f32 %v1551, %v1024
        %v1558 = vmul.f32 %v1552, %v1024
        %v1559 = vmul.f32 %v1553, %v1028
        %v1560 = vmul.f32 %v1554, %v1028
        %v1561 = vadd.f32 %v1525, %v1555
        %v1562 = vadd.f32 %v1526, %v1556
        %v1563 = vadd.f32 %v1527, %v1557
        %v1564 = vadd.f32 %v1528, %v1558
        %v1565 = vadd.f32 %v1529, %v1559
        %v1566 = vadd.f32 %v1530, %v1560
        %v1567 = vmul.f32 %v1561, %v1045
        %v1568 = vmul.f32 %v1562, %v1045
        %v1569 = vmul.f32 %v1563, %v1050
        %v1570 = vmul.f32 %v1564, %v1050
        %v1571 = vmul.f32 %v1565, %v1055
        %v1572 = vmul.f32 %v1566, %v1055
        %v1573 = vadd.f32 %v1567, %v1066
        %v1574 = vadd.f32 %v1568, %v1066
        %v1575 = vadd.f32 %v1569, %v1071
        %v1576 = vadd.f32 %v1570, %v1071
        %v1577 = vadd.f32 %v1571, %v1076
        %v1578 = vadd.f32 %v1572, %v1076
        %v1579 = vmax.f32 %v1573, 0.0
        %v1580 = vmax.f32 %v1574, 0.0
        %v1581 = vmax.f32 %v1575, 0.0
        %v1582 = vmax.f32 %v1576, 0.0
        %v1583 = vmax.f32 %v1577, 0.0
        %v1584 = vmax.f32 %v1578, 0.0
        %v1585 = vmin.f32 %v1579, 6.0
        %v1586 = vmin.f32 %v1580, 6.0
        %v1587 = vmin.f32 %v1581, 6.0
        %v1588 = vmin.f32 %v1582, 6.0
        %v1589 = vmin.f32 %v1583, 6.0
        %v1590 = vmin.f32 %v1584, 6.0
        %1591 = vmatpush.msra.mxu0 0.0
        %1592 = vmatpush.msra.mxu0 0.0
        %1593 = vmatpush.msra.mxu0 0.0
        %1594 = vmatpush.msra.mxu0 0.0
        %1595 = vmatpush.msra.mxu0 0.0
        %1596 = vmatpush.msra.mxu0 0.0
        %1597 = vmatpush.msra.mxu0 0.0
        %1598 = vmatpush.msra.mxu0 0.0
        %1599 = vmatpush.msra.mxu0 0.0
        %1600 = vmatpush.msra.mxu0 0.0
        %1601 = vmatpush.msra.mxu0 0.0
        %1602 = vmatpush.msra.mxu0 0.0
        %1603 = vmatpush.msra.mxu0 0.0
        %1604 = vmatpush.msra.mxu0 %v1589
        %1605 = vmatpush.msra.mxu0 %v1587
        %1606 = vmatpush.msra.mxu0 %v1585
        %1607 = vmatmul.f32.gmra.mxu0 %v1098
        %v1608 = vpop.f32.mrf.mxu0
        %v1609 = vadd.f32 0.0, %v1608
        %1610 = vdwg.mxu0
        %1611 = vmatpush.msra.mxu0 0.0
        %1612 = vmatpush.msra.mxu0 0.0
        %1613 = vmatpush.msra.mxu0 0.0
        %1614 = vmatpush.msra.mxu0 0.0
        %1615 = vmatpush.msra.mxu0 0.0
        %1616 = vmatpush.msra.mxu0 0.0
        %1617 = vmatpush.msra.mxu0 0.0
        %1618 = vmatpush.msra.mxu0 0.0
        %1619 = vmatpush.msra.mxu0 0.0
        %1620 = vmatpush.msra.mxu0 0.0
        %1621 = vmatpush.msra.mxu0 0.0
        %1622 = vmatpush.msra.mxu0 0.0
        %1623 = vmatpush.msra.mxu0 0.0
        %1624 = vmatpush.msra.mxu0 %v1590
        %1625 = vmatpush.msra.mxu0 %v1588
        %1626 = vmatpush.msra.mxu0 %v1586
        %1627 = vmatmul.f32.gmra.mxu0 %v1098
        %v1628 = vpop.f32.mrf.mxu0
        %v1629 = vadd.f32 0.0, %v1628
        %1630 = vdwg.mxu0
        %v1631 = vmul.f32 %v1609, %v1143
        %v1632 = vmul.f32 %v1629, %v1143
        %v1633 = vadd.f32 %v1631, %v1150
        %v1634 = vadd.f32 %v1632, %v1150
        %1635 = vst [vmem:[#allocation1] ss:$2 sm:$0xff] %v1169
        %v1636 = vld.sshfl [vmem:[#allocation1] sm:$0xff pattern:$0x75316420]
        %v1637 = vld.sshfl [vmem:[#allocation1 + $0x8] sm:$0xff pattern:$0x75316420]
        %v1640 = vadd.f32 %v1633, %v1636
        %v1641 = vadd.f32 %v1634, %v1637
        %v1644 = vrot.slane %v1641, 4
        %v1645 = vsel %vm1164, %v1640, %v1644
        %s1647 = scalar_lea.vmem %s355, 8 [#allocation2]
        %1648 = vst [vmem:[%s1647] sm:$0xff] %v1645
        %s1649 = sand.u32 %s247, 1
        %s1650 = scalar_lea.sflag [#allocation3], %s1649
        %s1651 = sand.u32 %s247, 1
        %s1652 = smul.addr %s1651, 16
        %s1653 = scalar_lea.vmem [#allocation2], %s1652
        // Predicated region
        $region61: #{tpu_custom_call.1} parent=59 // pred_check
          %p1654 = pneg %p257
        $region62: #{tpu_custom_call.1} parent=59 // pred_check_branch
          %1656 = sbr.rel (%p1654) target = $region64
        $region63: #{tpu_custom_call.1} parent=59 // pred_region
          %s1657 = smul.u32 2, %s24
          %1659 = vsyncadd %s1650, 0
          %s1660 = smul.addr %s1657, 2
          %s1661 = smul.addr %s1660, 4
          %s1662 = scalar_lea.hbm %s10, %s1661
          %s1663 = sshll.u32 %s1653, 4
          %s1664 = int_to_ptr.vmem [resolvable:$true] %s1663
          %s1665 = sshll.u32 %s1662, 4
          %s1666 = int_to_ptr.hbm [resolvable:$true] %s1665
          %1671 = dma.vmem_to_hbm [thread:$0]  %s1664, 256, %s1666, %s1650, 128, 128, 8
        $region64: #{tpu_custom_call.1} parent=59 // pred_fallthru
          _
      $region60: #{tpu_custom_call.1} parent=5 // pred_fallthru
        _
      %p1672 = scmp.le.s32.totalorder 2, %s19
      // Predicated region
      $region65: #{tpu_custom_call.1} parent=5 // pred_check
        %p1673 = pneg %p1672
      $region66: #{tpu_custom_call.1} parent=5 // pred_check_branch
        %1675 = sbr.rel (%p1673) target = $region68
      $region67: #{tpu_custom_call.1} parent=5 // pred_region
        %s1676 = ssub.s32 %s19, 2
        // Predicated region
        $region69: #{tpu_custom_call.1} parent=67 // pred_check
          %p1677 = pneg %p263
        $region70: #{tpu_custom_call.1} parent=67 // pred_check_branch
          %1679 = sbr.rel (%p1677) target = $region72
        $region71: #{tpu_custom_call.1} parent=67 // pred_region
          %s1680 = sand.u32 %s248, 1
          %s1681 = scalar_lea.sflag [#allocation3], %s1680
          %s1682 = sand.u32 %s248, 1
          %s1683 = smul.addr %s1682, 16
          %s1684 = scalar_lea.vmem [#allocation2], %s1683
          %1686 = dma.done %s1681, 256
        $region72: #{tpu_custom_call.1} parent=67 // pred_fallthru
          _
      $region68: #{tpu_custom_call.1} parent=5 // pred_fallthru
        _
    $region6: #{tpu_custom_call.1} parent=1 // loop_footer
      %s23 = sadd.s32 1, %s19
    $region7: #{tpu_custom_call.1} parent=1 // loop_footer_branch
      %18 = sbr.rel target = $region3
    $region8: #{tpu_custom_call.1} parent=1 // loop_exit
      _
    %1687 = vsyncpa [#allocation3], 1
    %s1688 = scalar_lea.sflag [#allocation3], 1
    %1689 = vsyncpa %s1688, 1

</llo_original>
